<compile_context>
chip_gen: v7x
topology: tpu7x:2x2x1
jax: 0.10.0
libtpu: 0.0.40
codegen_flags: <defaults>
</compile_context>

<pallas_src>
import functools

import jax
import jax.numpy as jnp
from jax import lax
from jax.experimental import pallas as pl
from jax.experimental.pallas import tpu as pltpu


def gru_fc_kernel(x_ref, wih_ref, whh_ref, bih_ref, bhhn_ref, wfc_ref, bfc_ref,
                  out_ref, h_ref, gi_ref, *, h_contract, seq_len,
                  padded_seq_len, unroll):
    """One (batch tile, time chunk) step of the GRU recurrence (+ fused Linear).

    x_ref   : (TC, Bt, I)   f32   time-major input chunk
    wih_ref : (I, 3Hp)      bf16  gate-major input->hidden weights [r|z|n]
    whh_ref : (Hk, 3Hp)     bf16  gate-major hidden->hidden weights, un-padded rows
    bih_ref : (1, 3Hp)      f32   b_ih with b_hh folded into the r/z columns
    bhhn_ref: (1, Hp)       f32   n-gate column of b_hh (stays inside r*(...))
    wfc_ref : (Hk, Cp)      bf16  final Linear weight (transposed, zero-padded)
    bfc_ref : (1, Cp)       f32
    out_ref : (Bt, Cp)      f32   written only on the last time chunk
    h_ref   : (Bt, Hp)      f32   VMEM scratch carrying h across time chunks
    gi_ref  : (TC*Bt, 3Hp)  f32   VMEM scratch: hoisted input projection
    """
    TC, Bt, I = x_ref.shape
    Hp = h_ref.shape[1]
    Hk = h_contract
    chunk = pl.program_id(1)

    @pl.when(chunk == 0)
    def _init():
        h_ref[...] = jnp.zeros_like(h_ref)

    # ---- Hoisted input projection: one MXU matmul for the whole chunk. ----
    x_flat = x_ref[...].reshape(TC * Bt, I).astype(jnp.bfloat16)
    gi_ref[...] = (jnp.dot(x_flat, wih_ref[...],
                           preferred_element_type=jnp.float32)
                   + bih_ref[...])

    whh = whh_ref[...]              # (Hk, 3Hp) bf16 — only real hidden rows
    bhh_n = bhhn_ref[...]           # (1, Hp)   f32

    def sigmoid(v):                 # single EUP op (tanh) instead of exp+recip
        return 0.5 * jnp.tanh(0.5 * v) + 0.5

    def step(t, h):
        row = pl.multiple_of(t * Bt, 8)
        gi_t = gi_ref[pl.ds(row, Bt), :]                              # (Bt, 3Hp)
        gh_t = jnp.dot(h[:, :Hk].astype(jnp.bfloat16), whh,
                       preferred_element_type=jnp.float32)            # (Bt, 3Hp)
        r = sigmoid(gi_t[:, 0 * Hp:1 * Hp] + gh_t[:, 0 * Hp:1 * Hp])
        z = sigmoid(gi_t[:, 1 * Hp:2 * Hp] + gh_t[:, 1 * Hp:2 * Hp])
        n = jnp.tanh(gi_t[:, 2 * Hp:3 * Hp]
                     + r * (gh_t[:, 2 * Hp:3 * Hp] + bhh_n))
        h_new = (1.0 - z) * n + z * h
        if seq_len != padded_seq_len:
            # Freeze h on zero-padded tail timesteps.
            h_new = jnp.where(chunk * TC + t < seq_len, h_new, h)
        return h_new

    h = lax.fori_loop(0, TC, step, h_ref[...], unroll=unroll)
    h_ref[...] = h

    @pl.when(chunk == pl.num_programs(1) - 1)
    def _finalize():
        out_ref[...] = (jnp.dot(h[:, :Hk].astype(jnp.bfloat16), wfc_ref[...],
                                preferred_element_type=jnp.float32)
                        + bfc_ref[...])


def _round_up(v, m):
    return (v + m - 1) // m * m


def rnn_forward(x, params, *, chunk_len=128, unroll=8):
    """x: (B, T, I) batch-first float32.  Returns (B, num_classes) float32."""
    B, T, I = x.shape
    H = params["w_hh"].shape[1]            # w_hh is (3H, H)
    C = params["w_fc"].shape[0]

    LANE, SUB = 128, 8
    # Fill MXU rows with batch before splitting into grid tiles.
    Bt = min(_round_up(max(B, SUB), SUB), 128)
    Bp = _round_up(max(B, Bt), Bt)
    n_btiles = Bp // Bt
    Hp = _round_up(max(H, LANE), LANE)     # each gate block 128-lane aligned
    Hk = _round_up(H, 16)                  # bf16-legal, un-padded contraction dim
    Cp = _round_up(max(C, LANE), LANE)     # lane-dense output slab

    # Bound the time chunk so the f32 input-projection slab stays ~8 MiB
    # (one tiling that fits v5e/v6e and v7x's 64 MiB VMEM).
    gi_budget = 8 * 1024 * 1024
    max_tc = max(1, gi_budget // (Bt * 3 * Hp * 4))
    TC = int(max(1, min(chunk_len, T, max_tc)))
    Tp = _round_up(T, TC)
    n_chunks = Tp // TC
    unroll = int(max(1, min(unroll, TC)))

    f32, bf16 = jnp.float32, jnp.bfloat16

    # Time-major, zero-padded input (Tp, Bp, I).
    # TODO(synk): for very long T this wrapper-side repack doubles x HBM traffic;
    # keep x batch-first in HBM and gather the time chunk via the BlockSpec.
    x_tm = jnp.zeros((Tp, Bp, I), f32).at[:T, :B, :].set(
        jnp.transpose(x.astype(f32), (1, 0, 2)))

    # Gate-major, 128-lane-aligned packing of PyTorch-layout GRU weights [r|z|n].
    def pack_w(w, k_pad):                   # (3H, K) -> (k_pad, 3Hp)
        k = w.shape[1]
        out = jnp.zeros((k_pad, 3 * Hp), f32)
        for g in range(3):
            out = out.at[:k, g * Hp:g * Hp + H].set(w[g * H:(g + 1) * H, :].T)
        return out

    wih_p = pack_w(params["w_ih"], I).astype(bf16)       # (I, 3Hp)
    whh_p = pack_w(params["w_hh"], Hk).astype(bf16)      # (Hk, 3Hp), zero-padded rows

    # Fold r/z columns of b_hh into b_ih (added once per chunk in the hoisted
    # projection); keep only the n-gate column of b_hh on the per-step chain.
    bih_p = jnp.zeros((1, 3 * Hp), f32)
    for g in range(3):
        v = params["b_ih"][g * H:(g + 1) * H]
        if g < 2:
            v = v + params["b_hh"][g * H:(g + 1) * H]
        bih_p = bih_p.at[0, g * Hp:g * Hp + H].set(v)
    bhhn_p = jnp.zeros((1, Hp), f32).at[0, :H].set(params["b_hh"][2 * H:3 * H])

    wfc_p = jnp.zeros((Hk, Cp), f32).at[:H, :C].set(
        params["w_fc"].T).astype(bf16)                    # (Hk, Cp)
    bfc_p = jnp.zeros((1, Cp), f32).at[0, :C].set(params["b_fc"])

    const = lambda b, t: (0, 0)
    kernel = functools.partial(gru_fc_kernel, h_contract=Hk, seq_len=T,
                               padded_seq_len=Tp, unroll=unroll)

    out_p = pl.pallas_call(
        kernel,
        out_shape=jax.ShapeDtypeStruct((Bp, Cp), f32),
        grid_spec=pltpu.PrefetchScalarGridSpec(
            num_scalar_prefetch=0,
            grid=(n_btiles, n_chunks),
            in_specs=[
                pl.BlockSpec((TC, Bt, I), lambda b, t: (t, b, 0)),  # streamed x
                pl.BlockSpec((I, 3 * Hp), const),
                pl.BlockSpec((Hk, 3 * Hp), const),
                pl.BlockSpec((1, 3 * Hp), const),
                pl.BlockSpec((1, Hp), const),
                pl.BlockSpec((Hk, Cp), const),
                pl.BlockSpec((1, Cp), const),
            ],
            out_specs=pl.BlockSpec((Bt, Cp), lambda b, t: (b, 0)),
            scratch_shapes=[
                pltpu.VMEM((Bt, Hp), f32),              # carried hidden state
                pltpu.VMEM((TC * Bt, 3 * Hp), f32),     # hoisted input projection
            ],
        ),
        compiler_params=pltpu.CompilerParams(
            # Batch tiles are independent (second TC on v7x); time is sequential.
            dimension_semantics=("parallel", "arbitrary"),
            vmem_limit_bytes=32 * 1024 * 1024,
        ),
    )(x_tm, wih_p, whh_p, bih_p, bhhn_p, wfc_p, bfc_p)

    return out_p[:B, :C]


def rnn_reference(x, params):
    """Pure-JAX f32 reference matching torch.nn.GRU + Linear semantics."""
    H = params["w_hh"].shape[1]
    wih, whh = params["w_ih"], params["w_hh"]
    bih, bhh = params["b_ih"], params["b_hh"]

    def step(h, x_t):
        gi = x_t @ wih.T + bih
        gh = h @ whh.T + bhh
        r = jax.nn.sigmoid(gi[:, :H] + gh[:, :H])
        z = jax.nn.sigmoid(gi[:, H:2 * H] + gh[:, H:2 * H])
        n = jnp.tanh(gi[:, 2 * H:] + r * gh[:, 2 * H:])
        return (1.0 - z) * n + z * h, None

    B = x.shape[0]
    h0 = jnp.zeros((B, H), dtype=jnp.float32)
    h_final, _ = lax.scan(step, h0, jnp.transpose(x, (1, 0, 2)))
    return h_final @ params["w_fc"].T + params["b_fc"]


def init_params(key, input_size, hidden_size, num_classes):
    """Deterministic init mimicking PyTorch's uniform(-1/sqrt(H), 1/sqrt(H))."""
    k = 1.0 / jnp.sqrt(jnp.float32(hidden_size))
    keys = jax.random.split(key, 6)
    u = lambda kk, shape: jax.random.uniform(kk, shape, jnp.float32, -k, k)
    return {
        "w_ih": u(keys[0], (3 * hidden_size, input_size)),
        "w_hh": u(keys[1], (3 * hidden_size, hidden_size)),
        "b_ih": u(keys[2], (3 * hidden_size,)),
        "b_hh": u(keys[3], (3 * hidden_size,)),
        "w_fc": u(keys[4], (num_classes, hidden_size)),
        "b_fc": u(keys[5], (num_classes,)),
    }


if __name__ == "__main__":
    B, T, I, H, C = 2, 8, 12, 32, 5
    key = jax.random.PRNGKey(0)
    kx, kp = jax.random.split(key)
    x = jax.random.normal(kx, (B, T, I), dtype=jnp.float32)
    params = init_params(kp, I, H, C)

    # Single-chunk case (matches module-default toy shapes).
    out = jax.block_until_ready(rnn_forward(x, params))
    ref = rnn_reference(x, params)
    assert out.shape == (B, C), out.shape
    max_err = jnp.max(jnp.abs(out - ref))
    # bf16 MXU inputs with f32 accumulation vs. pure-f32 reference -> loose tol.
    assert jnp.allclose(out, ref, atol=5e-2, rtol=5e-2), (max_err, out, ref)

    # Multi-chunk case: exercises the carried hidden-state scratch across the
    # "arbitrary" time axis and the padded-tail timestep mask.
    T2 = 40
    x2 = jax.random.normal(jax.random.PRNGKey(1), (B, T2, I), dtype=jnp.float32)
    out2 = jax.block_until_ready(rnn_forward(x2, params, chunk_len=16))
    ref2 = rnn_reference(x2, params)
    max_err2 = jnp.max(jnp.abs(out2 - ref2))
    assert jnp.allclose(out2, ref2, atol=1e-1, rtol=1e-1), (max_err2, out2, ref2)

    print("KERNEL_OK")
</pallas_src>

<mosaic_0001>
module attributes {stable_mosaic.version = 11 : i64} {
  func.func @gru_fc_kernel(%arg0: i32, %arg1: i32, %arg2: memref<8x8x12xf32, #tpu.memory_space<vmem>>, %arg3: memref<12x384xbf16, #tpu.memory_space<vmem>>, %arg4: memref<32x384xbf16, #tpu.memory_space<vmem>>, %arg5: memref<1x384xf32, #tpu.memory_space<vmem>>, %arg6: memref<1x128xf32, #tpu.memory_space<vmem>>, %arg7: memref<32x128xbf16, #tpu.memory_space<vmem>>, %arg8: memref<1x128xf32, #tpu.memory_space<vmem>>, %arg9: memref<8x128xf32, #tpu.memory_space<vmem>>, %arg10: memref<8x128xf32, #tpu.memory_space<vmem>>, %arg11: memref<64x384xf32, #tpu.memory_space<vmem>>) attributes {dimension_semantics = [#tpu.dimension_semantics<parallel>, #tpu.dimension_semantics<arbitrary>], iteration_bounds = array<i64: 1, 1>, scalar_prefetch = 0 : i64, scratch_operands = 2 : i64, tpu.core_type = #tpu.core_type<tc>, window_params = [{transform_indices = @transform_0, window_bounds = array<i64: 8, 8, 12>}, {pipeline_mode = #tpu.pipeline_mode<synchronous>, transform_indices = @transform_1, window_bounds = array<i64: 12, 384>}, {pipeline_mode = #tpu.pipeline_mode<synchronous>, transform_indices = @transform_2, window_bounds = array<i64: 32, 384>}, {pipeline_mode = #tpu.pipeline_mode<synchronous>, transform_indices = @transform_3, window_bounds = array<i64: 1, 384>}, {pipeline_mode = #tpu.pipeline_mode<synchronous>, transform_indices = @transform_4, window_bounds = array<i64: 1, 128>}, {pipeline_mode = #tpu.pipeline_mode<synchronous>, transform_indices = @transform_5, window_bounds = array<i64: 32, 128>}, {pipeline_mode = #tpu.pipeline_mode<synchronous>, transform_indices = @transform_6, window_bounds = array<i64: 1, 128>}, {transform_indices = @transform_7, window_bounds = array<i64: 8, 128>}]} {
    %c0_i32 = arith.constant 0 : i32
    %0 = arith.cmpi eq, %arg1, %c0_i32 : i32
    %1 = arith.extui %0 : i1 to i32
    %c0_i32_0 = arith.constant 0 : i32
    %2 = arith.cmpi ne, %1, %c0_i32_0 : i32
    scf.if %2 {
      %cst_100 = arith.constant 0.000000e+00 : f32
      %331 = vector.broadcast %cst_100 : f32 to vector<8x128xf32>
      %c0_101 = arith.constant 0 : index
      %c0_102 = arith.constant 0 : index
      %332 = vector.load %arg10[%c0_101, %c0_102] : memref<8x128xf32, #tpu.memory_space<vmem>>, vector<8x128xf32>
      tpu.vector_store %arg10[%c0_101, %c0_102], %331 {strides = array<i32>} : memref<8x128xf32, #tpu.memory_space<vmem>>, vector<8x128xf32>,
    } else {
    }
    %c0 = arith.constant 0 : index
    %c0_1 = arith.constant 0 : index
    %c0_2 = arith.constant 0 : index
    %3 = vector.load %arg2[%c0, %c0_1, %c0_2] : memref<8x8x12xf32, #tpu.memory_space<vmem>>, vector<8x8x12xf32>
    %4 = vector.shape_cast %3 : vector<8x8x12xf32> to vector<64x12xf32>
    %5 = arith.truncf %4 : vector<64x12xf32> to vector<64x12xbf16>
    %c0_3 = arith.constant 0 : index
    %c0_4 = arith.constant 0 : index
    %6 = vector.load %arg3[%c0_3, %c0_4] : memref<12x384xbf16, #tpu.memory_space<vmem>>, vector<12x384xbf16>
    %cst = arith.constant dense<0.000000e+00> : vector<64x384xf32>
    %7 = tpu.matmul %5, %6, %cst {dimension_numbers = #tpu.dot_dimension_numbers<[1], [0], [0], [1], [0, 0, 1, 1], [], []>} : vector<64x12xbf16>, vector<12x384xbf16>, vector<64x384xf32> -> vector<64x384xf32>
    %c0_5 = arith.constant 0 : index
    %c0_6 = arith.constant 0 : index
    %8 = vector.load %arg5[%c0_5, %c0_6] : memref<1x384xf32, #tpu.memory_space<vmem>>, vector<1x384xf32>
    %9 = vector.broadcast %8 : vector<1x384xf32> to vector<64x384xf32>
    %10 = arith.addf %7, %9 : vector<64x384xf32>
    %c0_7 = arith.constant 0 : index
    %c0_8 = arith.constant 0 : index
    %11 = vector.load %arg11[%c0_7, %c0_8] : memref<64x384xf32, #tpu.memory_space<vmem>>, vector<64x384xf32>
    tpu.vector_store %arg11[%c0_7, %c0_8], %10 {strides = array<i32>} : memref<64x384xf32, #tpu.memory_space<vmem>>, vector<64x384xf32>,
    %c0_9 = arith.constant 0 : index
    %c0_10 = arith.constant 0 : index
    %12 = vector.load %arg4[%c0_9, %c0_10] : memref<32x384xbf16, #tpu.memory_space<vmem>>, vector<32x384xbf16>
    %c0_11 = arith.constant 0 : index
    %c0_12 = arith.constant 0 : index
    %13 = vector.load %arg6[%c0_11, %c0_12] : memref<1x128xf32, #tpu.memory_space<vmem>>, vector<1x128xf32>
    %c0_13 = arith.constant 0 : index
    %c0_14 = arith.constant 0 : index
    %14 = vector.load %arg10[%c0_13, %c0_14] : memref<8x128xf32, #tpu.memory_space<vmem>>, vector<8x128xf32>
    %c0_i32_15 = arith.constant 0 : i32
    %c8_i32 = arith.constant 8 : i32
    %15 = arith.muli %c0_i32_15, %c8_i32 : i32
    %16 = tpu.assume_multiple %15, 8 : i32
    %17 = arith.index_cast %16 : i32 to index
    %c0_16 = arith.constant 0 : index
    %18 = vector.load %arg11[%17, %c0_16] : memref<64x384xf32, #tpu.memory_space<vmem>>, vector<8x384xf32>
    %19 = vector.extract_strided_slice %14 {offsets = [0, 0], sizes = [8, 32], strides = [1, 1]} : vector<8x128xf32> to vector<8x32xf32>
    %20 = arith.truncf %19 : vector<8x32xf32> to vector<8x32xbf16>
    %cst_17 = arith.constant dense<0.000000e+00> : vector<8x384xf32>
    %21 = tpu.matmul %20, %12, %cst_17 {dimension_numbers = #tpu.dot_dimension_numbers<[1], [0], [0], [1], [0, 0, 1, 1], [], []>} : vector<8x32xbf16>, vector<32x384xbf16>, vector<8x384xf32> -> vector<8x384xf32>
    %22 = vector.extract_strided_slice %18 {offsets = [0, 0], sizes = [8, 128], strides = [1, 1]} : vector<8x384xf32> to vector<8x128xf32>
    %23 = vector.extract_strided_slice %21 {offsets = [0, 0], sizes = [8, 128], strides = [1, 1]} : vector<8x384xf32> to vector<8x128xf32>
    %24 = arith.addf %22, %23 : vector<8x128xf32>
    %cst_18 = arith.constant 5.000000e-01 : f32
    %25 = vector.broadcast %cst_18 : f32 to vector<8x128xf32>
    %26 = arith.mulf %25, %24 : vector<8x128xf32>
    %27 = math.tanh %26 : vector<8x128xf32>
    %cst_19 = arith.constant 5.000000e-01 : f32
    %28 = vector.broadcast %cst_19 : f32 to vector<8x128xf32>
    %29 = arith.mulf %28, %27 : vector<8x128xf32>
    %cst_20 = arith.constant 5.000000e-01 : f32
    %30 = vector.broadcast %cst_20 : f32 to vector<8x128xf32>
    %31 = arith.addf %29, %30 : vector<8x128xf32>
    %32 = vector.extract_strided_slice %18 {offsets = [0, 128], sizes = [8, 128], strides = [1, 1]} : vector<8x384xf32> to vector<8x128xf32>
    %33 = vector.extract_strided_slice %21 {offsets = [0, 128], sizes = [8, 128], strides = [1, 1]} : vector<8x384xf32> to vector<8x128xf32>
    %34 = arith.addf %32, %33 : vector<8x128xf32>
    %cst_21 = arith.constant 5.000000e-01 : f32
    %35 = vector.broadcast %cst_21 : f32 to vector<8x128xf32>
    %36 = arith.mulf %35, %34 : vector<8x128xf32>
    %37 = math.tanh %36 : vector<8x128xf32>
    %cst_22 = arith.constant 5.000000e-01 : f32
    %38 = vector.broadcast %cst_22 : f32 to vector<8x128xf32>
    %39 = arith.mulf %38, %37 : vector<8x128xf32>
    %cst_23 = arith.constant 5.000000e-01 : f32
    %40 = vector.broadcast %cst_23 : f32 to vector<8x128xf32>
    %41 = arith.addf %39, %40 : vector<8x128xf32>
    %42 = vector.extract_strided_slice %18 {offsets = [0, 256], sizes = [8, 128], strides = [1, 1]} : vector<8x384xf32> to vector<8x128xf32>
    %43 = vector.extract_strided_slice %21 {offsets = [0, 256], sizes = [8, 128], strides = [1, 1]} : vector<8x384xf32> to vector<8x128xf32>
    %44 = vector.broadcast %13 : vector<1x128xf32> to vector<8x128xf32>
    %45 = arith.addf %43, %44 : vector<8x128xf32>
    %46 = arith.mulf %31, %45 : vector<8x128xf32>
    %47 = arith.addf %42, %46 : vector<8x128xf32>
    %48 = math.tanh %47 : vector<8x128xf32>
    %cst_24 = arith.constant 1.000000e+00 : f32
    %49 = vector.broadcast %cst_24 : f32 to vector<8x128xf32>
    %50 = arith.subf %49, %41 : vector<8x128xf32>
    %51 = arith.mulf %50, %48 : vector<8x128xf32>
    %52 = arith.mulf %41, %14 : vector<8x128xf32>
    %53 = arith.addf %51, %52 : vector<8x128xf32>
    %c1_i32 = arith.constant 1 : i32
    %c8_i32_25 = arith.constant 8 : i32
    %54 = arith.muli %c1_i32, %c8_i32_25 : i32
    %55 = tpu.assume_multiple %54, 8 : i32
    %56 = arith.index_cast %55 : i32 to index
    %c0_26 = arith.constant 0 : index
    %57 = vector.load %arg11[%56, %c0_26] : memref<64x384xf32, #tpu.memory_space<vmem>>, vector<8x384xf32>
    %58 = vector.extract_strided_slice %53 {offsets = [0, 0], sizes = [8, 32], strides = [1, 1]} : vector<8x128xf32> to vector<8x32xf32>
    %59 = arith.truncf %58 : vector<8x32xf32> to vector<8x32xbf16>
    %cst_27 = arith.constant dense<0.000000e+00> : vector<8x384xf32>
    %60 = tpu.matmul %59, %12, %cst_27 {dimension_numbers = #tpu.dot_dimension_numbers<[1], [0], [0], [1], [0, 0, 1, 1], [], []>} : vector<8x32xbf16>, vector<32x384xbf16>, vector<8x384xf32> -> vector<8x384xf32>
    %61 = vector.extract_strided_slice %57 {offsets = [0, 0], sizes = [8, 128], strides = [1, 1]} : vector<8x384xf32> to vector<8x128xf32>
    %62 = vector.extract_strided_slice %60 {offsets = [0, 0], sizes = [8, 128], strides = [1, 1]} : vector<8x384xf32> to vector<8x128xf32>
    %63 = arith.addf %61, %62 : vector<8x128xf32>
    %cst_28 = arith.constant 5.000000e-01 : f32
    %64 = vector.broadcast %cst_28 : f32 to vector<8x128xf32>
    %65 = arith.mulf %64, %63 : vector<8x128xf32>
    %66 = math.tanh %65 : vector<8x128xf32>
    %cst_29 = arith.constant 5.000000e-01 : f32
    %67 = vector.broadcast %cst_29 : f32 to vector<8x128xf32>
    %68 = arith.mulf %67, %66 : vector<8x128xf32>
    %cst_30 = arith.constant 5.000000e-01 : f32
    %69 = vector.broadcast %cst_30 : f32 to vector<8x128xf32>
    %70 = arith.addf %68, %69 : vector<8x128xf32>
    %71 = vector.extract_strided_slice %57 {offsets = [0, 128], sizes = [8, 128], strides = [1, 1]} : vector<8x384xf32> to vector<8x128xf32>
    %72 = vector.extract_strided_slice %60 {offsets = [0, 128], sizes = [8, 128], strides = [1, 1]} : vector<8x384xf32> to vector<8x128xf32>
    %73 = arith.addf %71, %72 : vector<8x128xf32>
    %cst_31 = arith.constant 5.000000e-01 : f32
    %74 = vector.broadcast %cst_31 : f32 to vector<8x128xf32>
    %75 = arith.mulf %74, %73 : vector<8x128xf32>
    %76 = math.tanh %75 : vector<8x128xf32>
    %cst_32 = arith.constant 5.000000e-01 : f32
    %77 = vector.broadcast %cst_32 : f32 to vector<8x128xf32>
    %78 = arith.mulf %77, %76 : vector<8x128xf32>
    %cst_33 = arith.constant 5.000000e-01 : f32
    %79 = vector.broadcast %cst_33 : f32 to vector<8x128xf32>
    %80 = arith.addf %78, %79 : vector<8x128xf32>
    %81 = vector.extract_strided_slice %57 {offsets = [0, 256], sizes = [8, 128], strides = [1, 1]} : vector<8x384xf32> to vector<8x128xf32>
    %82 = vector.extract_strided_slice %60 {offsets = [0, 256], sizes = [8, 128], strides = [1, 1]} : vector<8x384xf32> to vector<8x128xf32>
    %83 = vector.broadcast %13 : vector<1x128xf32> to vector<8x128xf32>
    %84 = arith.addf %82, %83 : vector<8x128xf32>
    %85 = arith.mulf %70, %84 : vector<8x128xf32>
    %86 = arith.addf %81, %85 : vector<8x128xf32>
    %87 = math.tanh %86 : vector<8x128xf32>
    %cst_34 = arith.constant 1.000000e+00 : f32
    %88 = vector.broadcast %cst_34 : f32 to vector<8x128xf32>
    %89 = arith.subf %88, %80 : vector<8x128xf32>
    %90 = arith.mulf %89, %87 : vector<8x128xf32>
    %91 = arith.mulf %80, %53 : vector<8x128xf32>
    %92 = arith.addf %90, %91 : vector<8x128xf32>
    %c2_i32 = arith.constant 2 : i32
    %c8_i32_35 = arith.constant 8 : i32
    %93 = arith.muli %c2_i32, %c8_i32_35 : i32
    %94 = tpu.assume_multiple %93, 8 : i32
    %95 = arith.index_cast %94 : i32 to index
    %c0_36 = arith.constant 0 : index
    %96 = vector.load %arg11[%95, %c0_36] : memref<64x384xf32, #tpu.memory_space<vmem>>, vector<8x384xf32>
    %97 = vector.extract_strided_slice %92 {offsets = [0, 0], sizes = [8, 32], strides = [1, 1]} : vector<8x128xf32> to vector<8x32xf32>
    %98 = arith.truncf %97 : vector<8x32xf32> to vector<8x32xbf16>
    %cst_37 = arith.constant dense<0.000000e+00> : vector<8x384xf32>
    %99 = tpu.matmul %98, %12, %cst_37 {dimension_numbers = #tpu.dot_dimension_numbers<[1], [0], [0], [1], [0, 0, 1, 1], [], []>} : vector<8x32xbf16>, vector<32x384xbf16>, vector<8x384xf32> -> vector<8x384xf32>
    %100 = vector.extract_strided_slice %96 {offsets = [0, 0], sizes = [8, 128], strides = [1, 1]} : vector<8x384xf32> to vector<8x128xf32>
    %101 = vector.extract_strided_slice %99 {offsets = [0, 0], sizes = [8, 128], strides = [1, 1]} : vector<8x384xf32> to vector<8x128xf32>
    %102 = arith.addf %100, %101 : vector<8x128xf32>
    %cst_38 = arith.constant 5.000000e-01 : f32
    %103 = vector.broadcast %cst_38 : f32 to vector<8x128xf32>
    %104 = arith.mulf %103, %102 : vector<8x128xf32>
    %105 = math.tanh %104 : vector<8x128xf32>
    %cst_39 = arith.constant 5.000000e-01 : f32
    %106 = vector.broadcast %cst_39 : f32 to vector<8x128xf32>
    %107 = arith.mulf %106, %105 : vector<8x128xf32>
    %cst_40 = arith.constant 5.000000e-01 : f32
    %108 = vector.broadcast %cst_40 : f32 to vector<8x128xf32>
    %109 = arith.addf %107, %108 : vector<8x128xf32>
    %110 = vector.extract_strided_slice %96 {offsets = [0, 128], sizes = [8, 128], strides = [1, 1]} : vector<8x384xf32> to vector<8x128xf32>
    %111 = vector.extract_strided_slice %99 {offsets = [0, 128], sizes = [8, 128], strides = [1, 1]} : vector<8x384xf32> to vector<8x128xf32>
    %112 = arith.addf %110, %111 : vector<8x128xf32>
    %cst_41 = arith.constant 5.000000e-01 : f32
    %113 = vector.broadcast %cst_41 : f32 to vector<8x128xf32>
    %114 = arith.mulf %113, %112 : vector<8x128xf32>
    %115 = math.tanh %114 : vector<8x128xf32>
    %cst_42 = arith.constant 5.000000e-01 : f32
    %116 = vector.broadcast %cst_42 : f32 to vector<8x128xf32>
    %117 = arith.mulf %116, %115 : vector<8x128xf32>
    %cst_43 = arith.constant 5.000000e-01 : f32
    %118 = vector.broadcast %cst_43 : f32 to vector<8x128xf32>
    %119 = arith.addf %117, %118 : vector<8x128xf32>
    %120 = vector.extract_strided_slice %96 {offsets = [0, 256], sizes = [8, 128], strides = [1, 1]} : vector<8x384xf32> to vector<8x128xf32>
    %121 = vector.extract_strided_slice %99 {offsets = [0, 256], sizes = [8, 128], strides = [1, 1]} : vector<8x384xf32> to vector<8x128xf32>
    %122 = vector.broadcast %13 : vector<1x128xf32> to vector<8x128xf32>
    %123 = arith.addf %121, %122 : vector<8x128xf32>
    %124 = arith.mulf %109, %123 : vector<8x128xf32>
    %125 = arith.addf %120, %124 : vector<8x128xf32>
    %126 = math.tanh %125 : vector<8x128xf32>
    %cst_44 = arith.constant 1.000000e+00 : f32
    %127 = vector.broadcast %cst_44 : f32 to vector<8x128xf32>
    %128 = arith.subf %127, %119 : vector<8x128xf32>
    %129 = arith.mulf %128, %126 : vector<8x128xf32>
    %130 = arith.mulf %119, %92 : vector<8x128xf32>
    %131 = arith.addf %129, %130 : vector<8x128xf32>
    %c3_i32 = arith.constant 3 : i32
    %c8_i32_45 = arith.constant 8 : i32
    %132 = arith.muli %c3_i32, %c8_i32_45 : i32
    %133 = tpu.assume_multiple %132, 8 : i32
    %134 = arith.index_cast %133 : i32 to index
    %c0_46 = arith.constant 0 : index
    %135 = vector.load %arg11[%134, %c0_46] : memref<64x384xf32, #tpu.memory_space<vmem>>, vector<8x384xf32>
    %136 = vector.extract_strided_slice %131 {offsets = [0, 0], sizes = [8, 32], strides = [1, 1]} : vector<8x128xf32> to vector<8x32xf32>
    %137 = arith.truncf %136 : vector<8x32xf32> to vector<8x32xbf16>
    %cst_47 = arith.constant dense<0.000000e+00> : vector<8x384xf32>
    %138 = tpu.matmul %137, %12, %cst_47 {dimension_numbers = #tpu.dot_dimension_numbers<[1], [0], [0], [1], [0, 0, 1, 1], [], []>} : vector<8x32xbf16>, vector<32x384xbf16>, vector<8x384xf32> -> vector<8x384xf32>
    %139 = vector.extract_strided_slice %135 {offsets = [0, 0], sizes = [8, 128], strides = [1, 1]} : vector<8x384xf32> to vector<8x128xf32>
    %140 = vector.extract_strided_slice %138 {offsets = [0, 0], sizes = [8, 128], strides = [1, 1]} : vector<8x384xf32> to vector<8x128xf32>
    %141 = arith.addf %139, %140 : vector<8x128xf32>
    %cst_48 = arith.constant 5.000000e-01 : f32
    %142 = vector.broadcast %cst_48 : f32 to vector<8x128xf32>
    %143 = arith.mulf %142, %141 : vector<8x128xf32>
    %144 = math.tanh %143 : vector<8x128xf32>
    %cst_49 = arith.constant 5.000000e-01 : f32
    %145 = vector.broadcast %cst_49 : f32 to vector<8x128xf32>
    %146 = arith.mulf %145, %144 : vector<8x128xf32>
    %cst_50 = arith.constant 5.000000e-01 : f32
    %147 = vector.broadcast %cst_50 : f32 to vector<8x128xf32>
    %148 = arith.addf %146, %147 : vector<8x128xf32>
    %149 = vector.extract_strided_slice %135 {offsets = [0, 128], sizes = [8, 128], strides = [1, 1]} : vector<8x384xf32> to vector<8x128xf32>
    %150 = vector.extract_strided_slice %138 {offsets = [0, 128], sizes = [8, 128], strides = [1, 1]} : vector<8x384xf32> to vector<8x128xf32>
    %151 = arith.addf %149, %150 : vector<8x128xf32>
    %cst_51 = arith.constant 5.000000e-01 : f32
    %152 = vector.broadcast %cst_51 : f32 to vector<8x128xf32>
    %153 = arith.mulf %152, %151 : vector<8x128xf32>
    %154 = math.tanh %153 : vector<8x128xf32>
    %cst_52 = arith.constant 5.000000e-01 : f32
    %155 = vector.broadcast %cst_52 : f32 to vector<8x128xf32>
    %156 = arith.mulf %155, %154 : vector<8x128xf32>
    %cst_53 = arith.constant 5.000000e-01 : f32
    %157 = vector.broadcast %cst_53 : f32 to vector<8x128xf32>
    %158 = arith.addf %156, %157 : vector<8x128xf32>
    %159 = vector.extract_strided_slice %135 {offsets = [0, 256], sizes = [8, 128], strides = [1, 1]} : vector<8x384xf32> to vector<8x128xf32>
    %160 = vector.extract_strided_slice %138 {offsets = [0, 256], sizes = [8, 128], strides = [1, 1]} : vector<8x384xf32> to vector<8x128xf32>
    %161 = vector.broadcast %13 : vector<1x128xf32> to vector<8x128xf32>
    %162 = arith.addf %160, %161 : vector<8x128xf32>
    %163 = arith.mulf %148, %162 : vector<8x128xf32>
    %164 = arith.addf %159, %163 : vector<8x128xf32>
    %165 = math.tanh %164 : vector<8x128xf32>
    %cst_54 = arith.constant 1.000000e+00 : f32
    %166 = vector.broadcast %cst_54 : f32 to vector<8x128xf32>
    %167 = arith.subf %166, %158 : vector<8x128xf32>
    %168 = arith.mulf %167, %165 : vector<8x128xf32>
    %169 = arith.mulf %158, %131 : vector<8x128xf32>
    %170 = arith.addf %168, %169 : vector<8x128xf32>
    %c4_i32 = arith.constant 4 : i32
    %c8_i32_55 = arith.constant 8 : i32
    %171 = arith.muli %c4_i32, %c8_i32_55 : i32
    %172 = tpu.assume_multiple %171, 8 : i32
    %173 = arith.index_cast %172 : i32 to index
    %c0_56 = arith.constant 0 : index
    %174 = vector.load %arg11[%173, %c0_56] : memref<64x384xf32, #tpu.memory_space<vmem>>, vector<8x384xf32>
    %175 = vector.extract_strided_slice %170 {offsets = [0, 0], sizes = [8, 32], strides = [1, 1]} : vector<8x128xf32> to vector<8x32xf32>
    %176 = arith.truncf %175 : vector<8x32xf32> to vector<8x32xbf16>
    %cst_57 = arith.constant dense<0.000000e+00> : vector<8x384xf32>
    %177 = tpu.matmul %176, %12, %cst_57 {dimension_numbers = #tpu.dot_dimension_numbers<[1], [0], [0], [1], [0, 0, 1, 1], [], []>} : vector<8x32xbf16>, vector<32x384xbf16>, vector<8x384xf32> -> vector<8x384xf32>
    %178 = vector.extract_strided_slice %174 {offsets = [0, 0], sizes = [8, 128], strides = [1, 1]} : vector<8x384xf32> to vector<8x128xf32>
    %179 = vector.extract_strided_slice %177 {offsets = [0, 0], sizes = [8, 128], strides = [1, 1]} : vector<8x384xf32> to vector<8x128xf32>
    %180 = arith.addf %178, %179 : vector<8x128xf32>
    %cst_58 = arith.constant 5.000000e-01 : f32
    %181 = vector.broadcast %cst_58 : f32 to vector<8x128xf32>
    %182 = arith.mulf %181, %180 : vector<8x128xf32>
    %183 = math.tanh %182 : vector<8x128xf32>
    %cst_59 = arith.constant 5.000000e-01 : f32
    %184 = vector.broadcast %cst_59 : f32 to vector<8x128xf32>
    %185 = arith.mulf %184, %183 : vector<8x128xf32>
    %cst_60 = arith.constant 5.000000e-01 : f32
    %186 = vector.broadcast %cst_60 : f32 to vector<8x128xf32>
    %187 = arith.addf %185, %186 : vector<8x128xf32>
    %188 = vector.extract_strided_slice %174 {offsets = [0, 128], sizes = [8, 128], strides = [1, 1]} : vector<8x384xf32> to vector<8x128xf32>
    %189 = vector.extract_strided_slice %177 {offsets = [0, 128], sizes = [8, 128], strides = [1, 1]} : vector<8x384xf32> to vector<8x128xf32>
    %190 = arith.addf %188, %189 : vector<8x128xf32>
    %cst_61 = arith.constant 5.000000e-01 : f32
    %191 = vector.broadcast %cst_61 : f32 to vector<8x128xf32>
    %192 = arith.mulf %191, %190 : vector<8x128xf32>
    %193 = math.tanh %192 : vector<8x128xf32>
    %cst_62 = arith.constant 5.000000e-01 : f32
    %194 = vector.broadcast %cst_62 : f32 to vector<8x128xf32>
    %195 = arith.mulf %194, %193 : vector<8x128xf32>
    %cst_63 = arith.constant 5.000000e-01 : f32
    %196 = vector.broadcast %cst_63 : f32 to vector<8x128xf32>
    %197 = arith.addf %195, %196 : vector<8x128xf32>
    %198 = vector.extract_strided_slice %174 {offsets = [0, 256], sizes = [8, 128], strides = [1, 1]} : vector<8x384xf32> to vector<8x128xf32>
    %199 = vector.extract_strided_slice %177 {offsets = [0, 256], sizes = [8, 128], strides = [1, 1]} : vector<8x384xf32> to vector<8x128xf32>
    %200 = vector.broadcast %13 : vector<1x128xf32> to vector<8x128xf32>
    %201 = arith.addf %199, %200 : vector<8x128xf32>
    %202 = arith.mulf %187, %201 : vector<8x128xf32>
    %203 = arith.addf %198, %202 : vector<8x128xf32>
    %204 = math.tanh %203 : vector<8x128xf32>
    %cst_64 = arith.constant 1.000000e+00 : f32
    %205 = vector.broadcast %cst_64 : f32 to vector<8x128xf32>
    %206 = arith.subf %205, %197 : vector<8x128xf32>
    %207 = arith.mulf %206, %204 : vector<8x128xf32>
    %208 = arith.mulf %197, %170 : vector<8x128xf32>
    %209 = arith.addf %207, %208 : vector<8x128xf32>
    %c5_i32 = arith.constant 5 : i32
    %c8_i32_65 = arith.constant 8 : i32
    %210 = arith.muli %c5_i32, %c8_i32_65 : i32
    %211 = tpu.assume_multiple %210, 8 : i32
    %212 = arith.index_cast %211 : i32 to index
    %c0_66 = arith.constant 0 : index
    %213 = vector.load %arg11[%212, %c0_66] : memref<64x384xf32, #tpu.memory_space<vmem>>, vector<8x384xf32>
    %214 = vector.extract_strided_slice %209 {offsets = [0, 0], sizes = [8, 32], strides = [1, 1]} : vector<8x128xf32> to vector<8x32xf32>
    %215 = arith.truncf %214 : vector<8x32xf32> to vector<8x32xbf16>
    %cst_67 = arith.constant dense<0.000000e+00> : vector<8x384xf32>
    %216 = tpu.matmul %215, %12, %cst_67 {dimension_numbers = #tpu.dot_dimension_numbers<[1], [0], [0], [1], [0, 0, 1, 1], [], []>} : vector<8x32xbf16>, vector<32x384xbf16>, vector<8x384xf32> -> vector<8x384xf32>
    %217 = vector.extract_strided_slice %213 {offsets = [0, 0], sizes = [8, 128], strides = [1, 1]} : vector<8x384xf32> to vector<8x128xf32>
    %218 = vector.extract_strided_slice %216 {offsets = [0, 0], sizes = [8, 128], strides = [1, 1]} : vector<8x384xf32> to vector<8x128xf32>
    %219 = arith.addf %217, %218 : vector<8x128xf32>
    %cst_68 = arith.constant 5.000000e-01 : f32
    %220 = vector.broadcast %cst_68 : f32 to vector<8x128xf32>
    %221 = arith.mulf %220, %219 : vector<8x128xf32>
    %222 = math.tanh %221 : vector<8x128xf32>
    %cst_69 = arith.constant 5.000000e-01 : f32
    %223 = vector.broadcast %cst_69 : f32 to vector<8x128xf32>
    %224 = arith.mulf %223, %222 : vector<8x128xf32>
    %cst_70 = arith.constant 5.000000e-01 : f32
    %225 = vector.broadcast %cst_70 : f32 to vector<8x128xf32>
    %226 = arith.addf %224, %225 : vector<8x128xf32>
    %227 = vector.extract_strided_slice %213 {offsets = [0, 128], sizes = [8, 128], strides = [1, 1]} : vector<8x384xf32> to vector<8x128xf32>
    %228 = vector.extract_strided_slice %216 {offsets = [0, 128], sizes = [8, 128], strides = [1, 1]} : vector<8x384xf32> to vector<8x128xf32>
    %229 = arith.addf %227, %228 : vector<8x128xf32>
    %cst_71 = arith.constant 5.000000e-01 : f32
    %230 = vector.broadcast %cst_71 : f32 to vector<8x128xf32>
    %231 = arith.mulf %230, %229 : vector<8x128xf32>
    %232 = math.tanh %231 : vector<8x128xf32>
    %cst_72 = arith.constant 5.000000e-01 : f32
    %233 = vector.broadcast %cst_72 : f32 to vector<8x128xf32>
    %234 = arith.mulf %233, %232 : vector<8x128xf32>
    %cst_73 = arith.constant 5.000000e-01 : f32
    %235 = vector.broadcast %cst_73 : f32 to vector<8x128xf32>
    %236 = arith.addf %234, %235 : vector<8x128xf32>
    %237 = vector.extract_strided_slice %213 {offsets = [0, 256], sizes = [8, 128], strides = [1, 1]} : vector<8x384xf32> to vector<8x128xf32>
    %238 = vector.extract_strided_slice %216 {offsets = [0, 256], sizes = [8, 128], strides = [1, 1]} : vector<8x384xf32> to vector<8x128xf32>
    %239 = vector.broadcast %13 : vector<1x128xf32> to vector<8x128xf32>
    %240 = arith.addf %238, %239 : vector<8x128xf32>
    %241 = arith.mulf %226, %240 : vector<8x128xf32>
    %242 = arith.addf %237, %241 : vector<8x128xf32>
    %243 = math.tanh %242 : vector<8x128xf32>
    %cst_74 = arith.constant 1.000000e+00 : f32
    %244 = vector.broadcast %cst_74 : f32 to vector<8x128xf32>
    %245 = arith.subf %244, %236 : vector<8x128xf32>
    %246 = arith.mulf %245, %243 : vector<8x128xf32>
    %247 = arith.mulf %236, %209 : vector<8x128xf32>
    %248 = arith.addf %246, %247 : vector<8x128xf32>
    %c6_i32 = arith.constant 6 : i32
    %c8_i32_75 = arith.constant 8 : i32
    %249 = arith.muli %c6_i32, %c8_i32_75 : i32
    %250 = tpu.assume_multiple %249, 8 : i32
    %251 = arith.index_cast %250 : i32 to index
    %c0_76 = arith.constant 0 : index
    %252 = vector.load %arg11[%251, %c0_76] : memref<64x384xf32, #tpu.memory_space<vmem>>, vector<8x384xf32>
    %253 = vector.extract_strided_slice %248 {offsets = [0, 0], sizes = [8, 32], strides = [1, 1]} : vector<8x128xf32> to vector<8x32xf32>
    %254 = arith.truncf %253 : vector<8x32xf32> to vector<8x32xbf16>
    %cst_77 = arith.constant dense<0.000000e+00> : vector<8x384xf32>
    %255 = tpu.matmul %254, %12, %cst_77 {dimension_numbers = #tpu.dot_dimension_numbers<[1], [0], [0], [1], [0, 0, 1, 1], [], []>} : vector<8x32xbf16>, vector<32x384xbf16>, vector<8x384xf32> -> vector<8x384xf32>
    %256 = vector.extract_strided_slice %252 {offsets = [0, 0], sizes = [8, 128], strides = [1, 1]} : vector<8x384xf32> to vector<8x128xf32>
    %257 = vector.extract_strided_slice %255 {offsets = [0, 0], sizes = [8, 128], strides = [1, 1]} : vector<8x384xf32> to vector<8x128xf32>
    %258 = arith.addf %256, %257 : vector<8x128xf32>
    %cst_78 = arith.constant 5.000000e-01 : f32
    %259 = vector.broadcast %cst_78 : f32 to vector<8x128xf32>
    %260 = arith.mulf %259, %258 : vector<8x128xf32>
    %261 = math.tanh %260 : vector<8x128xf32>
    %cst_79 = arith.constant 5.000000e-01 : f32
    %262 = vector.broadcast %cst_79 : f32 to vector<8x128xf32>
    %263 = arith.mulf %262, %261 : vector<8x128xf32>
    %cst_80 = arith.constant 5.000000e-01 : f32
    %264 = vector.broadcast %cst_80 : f32 to vector<8x128xf32>
    %265 = arith.addf %263, %264 : vector<8x128xf32>
    %266 = vector.extract_strided_slice %252 {offsets = [0, 128], sizes = [8, 128], strides = [1, 1]} : vector<8x384xf32> to vector<8x128xf32>
    %267 = vector.extract_strided_slice %255 {offsets = [0, 128], sizes = [8, 128], strides = [1, 1]} : vector<8x384xf32> to vector<8x128xf32>
    %268 = arith.addf %266, %267 : vector<8x128xf32>
    %cst_81 = arith.constant 5.000000e-01 : f32
    %269 = vector.broadcast %cst_81 : f32 to vector<8x128xf32>
    %270 = arith.mulf %269, %268 : vector<8x128xf32>
    %271 = math.tanh %270 : vector<8x128xf32>
    %cst_82 = arith.constant 5.000000e-01 : f32
    %272 = vector.broadcast %cst_82 : f32 to vector<8x128xf32>
    %273 = arith.mulf %272, %271 : vector<8x128xf32>
    %cst_83 = arith.constant 5.000000e-01 : f32
    %274 = vector.broadcast %cst_83 : f32 to vector<8x128xf32>
    %275 = arith.addf %273, %274 : vector<8x128xf32>
    %276 = vector.extract_strided_slice %252 {offsets = [0, 256], sizes = [8, 128], strides = [1, 1]} : vector<8x384xf32> to vector<8x128xf32>
    %277 = vector.extract_strided_slice %255 {offsets = [0, 256], sizes = [8, 128], strides = [1, 1]} : vector<8x384xf32> to vector<8x128xf32>
    %278 = vector.broadcast %13 : vector<1x128xf32> to vector<8x128xf32>
    %279 = arith.addf %277, %278 : vector<8x128xf32>
    %280 = arith.mulf %265, %279 : vector<8x128xf32>
    %281 = arith.addf %276, %280 : vector<8x128xf32>
    %282 = math.tanh %281 : vector<8x128xf32>
    %cst_84 = arith.constant 1.000000e+00 : f32
    %283 = vector.broadcast %cst_84 : f32 to vector<8x128xf32>
    %284 = arith.subf %283, %275 : vector<8x128xf32>
    %285 = arith.mulf %284, %282 : vector<8x128xf32>
    %286 = arith.mulf %275, %248 : vector<8x128xf32>
    %287 = arith.addf %285, %286 : vector<8x128xf32>
    %c7_i32 = arith.constant 7 : i32
    %c8_i32_85 = arith.constant 8 : i32
    %288 = arith.muli %c7_i32, %c8_i32_85 : i32
    %289 = tpu.assume_multiple %288, 8 : i32
    %290 = arith.index_cast %289 : i32 to index
    %c0_86 = arith.constant 0 : index
    %291 = vector.load %arg11[%290, %c0_86] : memref<64x384xf32, #tpu.memory_space<vmem>>, vector<8x384xf32>
    %292 = vector.extract_strided_slice %287 {offsets = [0, 0], sizes = [8, 32], strides = [1, 1]} : vector<8x128xf32> to vector<8x32xf32>
    %293 = arith.truncf %292 : vector<8x32xf32> to vector<8x32xbf16>
    %cst_87 = arith.constant dense<0.000000e+00> : vector<8x384xf32>
    %294 = tpu.matmul %293, %12, %cst_87 {dimension_numbers = #tpu.dot_dimension_numbers<[1], [0], [0], [1], [0, 0, 1, 1], [], []>} : vector<8x32xbf16>, vector<32x384xbf16>, vector<8x384xf32> -> vector<8x384xf32>
    %295 = vector.extract_strided_slice %291 {offsets = [0, 0], sizes = [8, 128], strides = [1, 1]} : vector<8x384xf32> to vector<8x128xf32>
    %296 = vector.extract_strided_slice %294 {offsets = [0, 0], sizes = [8, 128], strides = [1, 1]} : vector<8x384xf32> to vector<8x128xf32>
    %297 = arith.addf %295, %296 : vector<8x128xf32>
    %cst_88 = arith.constant 5.000000e-01 : f32
    %298 = vector.broadcast %cst_88 : f32 to vector<8x128xf32>
    %299 = arith.mulf %298, %297 : vector<8x128xf32>
    %300 = math.tanh %299 : vector<8x128xf32>
    %cst_89 = arith.constant 5.000000e-01 : f32
    %301 = vector.broadcast %cst_89 : f32 to vector<8x128xf32>
    %302 = arith.mulf %301, %300 : vector<8x128xf32>
    %cst_90 = arith.constant 5.000000e-01 : f32
    %303 = vector.broadcast %cst_90 : f32 to vector<8x128xf32>
    %304 = arith.addf %302, %303 : vector<8x128xf32>
    %305 = vector.extract_strided_slice %291 {offsets = [0, 128], sizes = [8, 128], strides = [1, 1]} : vector<8x384xf32> to vector<8x128xf32>
    %306 = vector.extract_strided_slice %294 {offsets = [0, 128], sizes = [8, 128], strides = [1, 1]} : vector<8x384xf32> to vector<8x128xf32>
    %307 = arith.addf %305, %306 : vector<8x128xf32>
    %cst_91 = arith.constant 5.000000e-01 : f32
    %308 = vector.broadcast %cst_91 : f32 to vector<8x128xf32>
    %309 = arith.mulf %308, %307 : vector<8x128xf32>
    %310 = math.tanh %309 : vector<8x128xf32>
    %cst_92 = arith.constant 5.000000e-01 : f32
    %311 = vector.broadcast %cst_92 : f32 to vector<8x128xf32>
    %312 = arith.mulf %311, %310 : vector<8x128xf32>
    %cst_93 = arith.constant 5.000000e-01 : f32
    %313 = vector.broadcast %cst_93 : f32 to vector<8x128xf32>
    %314 = arith.addf %312, %313 : vector<8x128xf32>
    %315 = vector.extract_strided_slice %291 {offsets = [0, 256], sizes = [8, 128], strides = [1, 1]} : vector<8x384xf32> to vector<8x128xf32>
    %316 = vector.extract_strided_slice %294 {offsets = [0, 256], sizes = [8, 128], strides = [1, 1]} : vector<8x384xf32> to vector<8x128xf32>
    %317 = vector.broadcast %13 : vector<1x128xf32> to vector<8x128xf32>
    %318 = arith.addf %316, %317 : vector<8x128xf32>
    %319 = arith.mulf %304, %318 : vector<8x128xf32>
    %320 = arith.addf %315, %319 : vector<8x128xf32>
    %321 = math.tanh %320 : vector<8x128xf32>
    %cst_94 = arith.constant 1.000000e+00 : f32
    %322 = vector.broadcast %cst_94 : f32 to vector<8x128xf32>
    %323 = arith.subf %322, %314 : vector<8x128xf32>
    %324 = arith.mulf %323, %321 : vector<8x128xf32>
    %325 = arith.mulf %314, %287 : vector<8x128xf32>
    %326 = arith.addf %324, %325 : vector<8x128xf32>
    %c8_i32_95 = arith.constant 8 : i32
    %c0_96 = arith.constant 0 : index
    %c0_97 = arith.constant 0 : index
    %327 = vector.load %arg10[%c0_96, %c0_97] : memref<8x128xf32, #tpu.memory_space<vmem>>, vector<8x128xf32>
    tpu.vector_store %arg10[%c0_96, %c0_97], %326 {strides = array<i32>} : memref<8x128xf32, #tpu.memory_space<vmem>>, vector<8x128xf32>,
    %c0_i32_98 = arith.constant 0 : i32
    %328 = arith.cmpi eq, %arg1, %c0_i32_98 : i32
    %329 = arith.extui %328 : i1 to i32
    %c0_i32_99 = arith.constant 0 : i32
    %330 = arith.cmpi ne, %329, %c0_i32_99 : i32
    scf.if %330 {
      %331 = vector.extract_strided_slice %326 {offsets = [0, 0], sizes = [8, 32], strides = [1, 1]} : vector<8x128xf32> to vector<8x32xf32>
      %332 = arith.truncf %331 : vector<8x32xf32> to vector<8x32xbf16>
      %c0_100 = arith.constant 0 : index
      %c0_101 = arith.constant 0 : index
      %333 = vector.load %arg7[%c0_100, %c0_101] : memref<32x128xbf16, #tpu.memory_space<vmem>>, vector<32x128xbf16>
      %cst_102 = arith.constant dense<0.000000e+00> : vector<8x128xf32>
      %334 = tpu.matmul %332, %333, %cst_102 {dimension_numbers = #tpu.dot_dimension_numbers<[1], [0], [0], [1], [0, 0, 1, 1], [], []>} : vector<8x32xbf16>, vector<32x128xbf16>, vector<8x128xf32> -> vector<8x128xf32>
      %c0_103 = arith.constant 0 : index
      %c0_104 = arith.constant 0 : index
      %335 = vector.load %arg8[%c0_103, %c0_104] : memref<1x128xf32, #tpu.memory_space<vmem>>, vector<1x128xf32>
      %336 = vector.broadcast %335 : vector<1x128xf32> to vector<8x128xf32>
      %337 = arith.addf %334, %336 : vector<8x128xf32>
      %c0_105 = arith.constant 0 : index
      %c0_106 = arith.constant 0 : index
      %338 = vector.load %arg9[%c0_105, %c0_106] : memref<8x128xf32, #tpu.memory_space<vmem>>, vector<8x128xf32>
      tpu.vector_store %arg9[%c0_105, %c0_106], %337 {strides = array<i32>} : memref<8x128xf32, #tpu.memory_space<vmem>>, vector<8x128xf32>,
    } else {
    }
    return
  }
  func.func @transform_0(%arg0: i32, %arg1: i32) -> (i32, i32, i32) {
    %c0_i32 = arith.constant 0 : i32
    %c0_i32_0 = arith.constant 0 : i32
    return %arg1, %arg0, %c0_i32 : i32, i32, i32
  }
  func.func @transform_1(%arg0: i32, %arg1: i32) -> (i32, i32) {
    %c0_i32 = arith.constant 0 : i32
    %c0_i32_0 = arith.constant 0 : i32
    %c0_i32_1 = arith.constant 0 : i32
    return %c0_i32, %c0_i32_0 : i32, i32
  }
  func.func @transform_2(%arg0: i32, %arg1: i32) -> (i32, i32) {
    %c0_i32 = arith.constant 0 : i32
    %c0_i32_0 = arith.constant 0 : i32
    %c0_i32_1 = arith.constant 0 : i32
    return %c0_i32, %c0_i32_0 : i32, i32
  }
  func.func @transform_3(%arg0: i32, %arg1: i32) -> (i32, i32) {
    %c0_i32 = arith.constant 0 : i32
    %c0_i32_0 = arith.constant 0 : i32
    %c0_i32_1 = arith.constant 0 : i32
    return %c0_i32, %c0_i32_0 : i32, i32
  }
  func.func @transform_4(%arg0: i32, %arg1: i32) -> (i32, i32) {
    %c0_i32 = arith.constant 0 : i32
    %c0_i32_0 = arith.constant 0 : i32
    %c0_i32_1 = arith.constant 0 : i32
    return %c0_i32, %c0_i32_0 : i32, i32
  }
  func.func @transform_5(%arg0: i32, %arg1: i32) -> (i32, i32) {
    %c0_i32 = arith.constant 0 : i32
    %c0_i32_0 = arith.constant 0 : i32
    %c0_i32_1 = arith.constant 0 : i32
    return %c0_i32, %c0_i32_0 : i32, i32
  }
  func.func @transform_6(%arg0: i32, %arg1: i32) -> (i32, i32) {
    %c0_i32 = arith.constant 0 : i32
    %c0_i32_0 = arith.constant 0 : i32
    %c0_i32_1 = arith.constant 0 : i32
    return %c0_i32, %c0_i32_0 : i32, i32
  }
  func.func @transform_7(%arg0: i32, %arg1: i32) -> (i32, i32) {
    %c0_i32 = arith.constant 0 : i32
    %c0_i32_0 = arith.constant 0 : i32
    return %arg0, %c0_i32 : i32, i32
  }
}

</mosaic_0001>

<llo_original>
// kernel: tpu_custom_call.1
$region0: #{tpu_custom_call.1}
  #allocation0 [shape = 'u32[]', space=smem, size = 0x4, offset = 0x4, fixed_abs, tag = 'smem constant byte address 0x4 - core index']
  #allocation1 [shape = 'u32[144,128]{1,0:T(1,128)}', space=vmem, size = 0x12000, scoped, tag = 'internal scratch']
  #allocation2 [shape = 'f32[8,128]{1,0:T(8,128)}', space=vmem, size = 0x1000, scoped, tag = 'scratch operand']
  #allocation3 [shape = 'f32[64,384]{1,0:T(8,128)}', space=vmem, size = 0x18000, scoped, tag = 'scratch operand']
  %s0 = inlined_call_operand.hbm [shape: f32[8,8,12], index: 0, kind: input, shape index: {}]
  %s1 = inlined_call_operand.hbm [shape: bf16[12,384], index: 1, kind: input, shape index: {}]
  %s2 = inlined_call_operand.hbm [shape: bf16[32,384], index: 2, kind: input, shape index: {}]
  %s3 = inlined_call_operand.hbm [shape: f32[1,384], index: 3, kind: input, shape index: {}]
  %s4 = inlined_call_operand.vmem [shape: f32[1,128], index: 4, kind: input, shape index: {}]
  %s5 = inlined_call_operand.vmem [shape: bf16[32,128], index: 5, kind: input, shape index: {}]
  %s6 = inlined_call_operand.vmem [shape: f32[1,128], index: 6, kind: input, shape index: {}]
  %s7 = inlined_call_operand.hbm [shape: f32[8,128], index: 7, kind: output, shape index: {}]
  %s8 = sld [smem:[#allocation0]]
  $region62: #{tpu_custom_call.1} parent=0
    _
  %s10 = ssub.s32 1, %s8
  %s11 = scalar_select 0, %s10, %s8
  $region1: #{tpu_custom_call.1} parent=0
    #allocation4 [shape = 'u8[32768]{0}', space=vmem, size = 0x8000, scoped, tag = 'input window, operand 0, single buffered']
    #allocation5 [shape = 's32[1]{0}', space=sflag, size = 0x4, scoped, tag = 'scoped memory for tpu_custom_call.1']
    #allocation6 [shape = 's32[1]{0}', space=sflag, size = 0x4, scoped, tag = 'scoped memory for tpu_custom_call.1']
    #allocation7 [shape = 'u8[12288]{0}', space=vmem, size = 0x3000, scoped, tag = 'input window, operand 1, single buffered']
    #allocation8 [shape = 's32[1]{0}', space=sflag, size = 0x4, scoped, tag = 'scoped memory for tpu_custom_call.1']
    #allocation9 [shape = 'u8[24576]{0}', space=vmem, size = 0x6000, scoped, tag = 'input window, operand 2, single buffered']
    #allocation10 [shape = 'u8[1536]{0}', space=vmem, size = 0x800, scoped, tag = 'input window, operand 3, single buffered']
    #allocation11 [shape = 's32[1]{0}', space=sflag, size = 0x4, scoped, tag = 'scoped memory for tpu_custom_call.1']
    #allocation12 [shape = 'u8[4096]{0}', space=vmem, size = 0x1000, scoped, tag = 'output window, operand 0, single buffered']
    %12 = vsyncpa [#allocation5], 0
    %13 = vsyncpa [#allocation8], 0
    %14 = vsyncpa [#allocation11], 0
    %15 = vsyncpa [#allocation6], 0
    // Predicated region
    $region2: #{tpu_custom_call.1} parent=1 // pred_check
      _
    $region3: #{tpu_custom_call.1} parent=1 // pred_check_branch
      %17 = sbr.rel (0) target = $region5
    $region4: #{tpu_custom_call.1} parent=1 // pred_region
      %s19 = ssub.s32 1024, 1024
      %20 = vsyncadd [#allocation5], %s19
      %s21 = sshll.u32 [#allocation4], 4
      %s22 = int_to_ptr.vmem [resolvable:$true] %s21
      %27 = dma.hbm_to_vmem [thread:$0]  %s0, 1024, %s22, [#allocation5], 128, 128, 8
    $region5: #{tpu_custom_call.1} parent=1 // pred_fallthru
      _
    // Predicated region
    $region6: #{tpu_custom_call.1} parent=1 // pred_check
      _
    $region7: #{tpu_custom_call.1} parent=1 // pred_check_branch
      %29 = sbr.rel (0) target = $region9
    $region8: #{tpu_custom_call.1} parent=1 // pred_region
      %s31 = ssub.s32 384, 384
      %32 = vsyncadd [#allocation8], %s31
      %s33 = sshll.u32 [#allocation7], 4
      %s34 = int_to_ptr.vmem [resolvable:$true] %s33
      %39 = dma.hbm_to_vmem [thread:$0]  %s1, 384, %s34, [#allocation8], 192, 192, 12
    $region9: #{tpu_custom_call.1} parent=1 // pred_fallthru
      _
    // Predicated region
    $region10: #{tpu_custom_call.1} parent=1 // pred_check
      _
    $region11: #{tpu_custom_call.1} parent=1 // pred_check_branch
      %41 = sbr.rel (0) target = $region13
    $region12: #{tpu_custom_call.1} parent=1 // pred_region
      %s43 = ssub.s32 768, 768
      %44 = vsyncadd [#allocation8], %s43
      %s45 = sshll.u32 [#allocation9], 4
      %s46 = int_to_ptr.vmem [resolvable:$true] %s45
      %51 = dma.hbm_to_vmem [thread:$0]  %s2, 768, %s46, [#allocation8], 192, 192, 12
    $region13: #{tpu_custom_call.1} parent=1 // pred_fallthru
      _
    // Predicated region
    $region14: #{tpu_custom_call.1} parent=1 // pred_check
      _
    $region15: #{tpu_custom_call.1} parent=1 // pred_check_branch
      %53 = sbr.rel (0) target = $region17
    $region16: #{tpu_custom_call.1} parent=1 // pred_region
      %s55 = ssub.s32 48, 48
      %56 = vsyncadd [#allocation11], %s55
      %s58 = sshll.u32 [#allocation10], 4
      %s59 = int_to_ptr.vmem [resolvable:$true] %s58
      %61 = dma.hbm_to_vmem [thread:$0]  %s3, 48, %s59, [#allocation11]
    $region17: #{tpu_custom_call.1} parent=1 // pred_fallthru
      _
    // Predicated region
    $region18: #{tpu_custom_call.1} parent=1 // pred_check
      _
    $region19: #{tpu_custom_call.1} parent=1 // pred_check_branch
      %63 = sbr.rel (0) target = $region21
    $region20: #{tpu_custom_call.1} parent=1 // pred_region
      _
    $region21: #{tpu_custom_call.1} parent=1 // pred_fallthru
      _
    // Predicated region
    $region22: #{tpu_custom_call.1} parent=1 // pred_check
      _
    $region23: #{tpu_custom_call.1} parent=1 // pred_check_branch
      %65 = sbr.rel (0) target = $region25
    $region24: #{tpu_custom_call.1} parent=1 // pred_region
      _
    $region25: #{tpu_custom_call.1} parent=1 // pred_fallthru
      _
    // Predicated region
    $region26: #{tpu_custom_call.1} parent=1 // pred_check
      _
    $region27: #{tpu_custom_call.1} parent=1 // pred_check_branch
      %67 = sbr.rel (0) target = $region29
    $region28: #{tpu_custom_call.1} parent=1 // pred_region
      _
    $region29: #{tpu_custom_call.1} parent=1 // pred_fallthru
      _
    // Predicated region
    $region30: #{tpu_custom_call.1} parent=1 // pred_check
      _
    $region31: #{tpu_custom_call.1} parent=1 // pred_check_branch
      %69 = sbr.rel (0) target = $region33
    $region32: #{tpu_custom_call.1} parent=1 // pred_region
      %70 = dma.done [#allocation5], 1024
    $region33: #{tpu_custom_call.1} parent=1 // pred_fallthru
      _
    // Predicated region
    $region34: #{tpu_custom_call.1} parent=1 // pred_check
      _
    $region35: #{tpu_custom_call.1} parent=1 // pred_check_branch
      %72 = sbr.rel (0) target = $region37
    $region36: #{tpu_custom_call.1} parent=1 // pred_region
      %73 = dma.done [#allocation8], 384
    $region37: #{tpu_custom_call.1} parent=1 // pred_fallthru
      _
    // Predicated region
    $region38: #{tpu_custom_call.1} parent=1 // pred_check
      _
    $region39: #{tpu_custom_call.1} parent=1 // pred_check_branch
      %75 = sbr.rel (0) target = $region41
    $region40: #{tpu_custom_call.1} parent=1 // pred_region
      %76 = dma.done [#allocation8], 768
    $region41: #{tpu_custom_call.1} parent=1 // pred_fallthru
      _
    // Predicated region
    $region42: #{tpu_custom_call.1} parent=1 // pred_check
      _
    $region43: #{tpu_custom_call.1} parent=1 // pred_check_branch
      %78 = sbr.rel (0) target = $region45
    $region44: #{tpu_custom_call.1} parent=1 // pred_region
      %79 = dma.done [#allocation11], 48
    $region45: #{tpu_custom_call.1} parent=1 // pred_fallthru
      _
    %p81 = scmp.eq.s32.totalorder 0, 0
    // Predicated region
    $region46: #{tpu_custom_call.1} parent=1 // pred_check
      %p82 = pneg %p81
    $region47: #{tpu_custom_call.1} parent=1 // pred_check_branch
      %84 = sbr.rel (%p82) target = $region49
    $region48: #{tpu_custom_call.1} parent=1 // pred_region
      %85 = vst [vmem:[#allocation2] sm:$0xff] 0.0
    $region49: #{tpu_custom_call.1} parent=1 // pred_fallthru
      _
    %v86 = vld [vmem:[#allocation4] sm:$0xff]
    %v87 = vld [vmem:[#allocation4 + $0x8] sm:$0xff]
    %v88 = vld [vmem:[#allocation4 + $0x10] sm:$0xff]
    %v89 = vld [vmem:[#allocation4 + $0x18] sm:$0xff]
    %v90 = vld [vmem:[#allocation4 + $0x20] sm:$0xff]
    %v91 = vld [vmem:[#allocation4 + $0x28] sm:$0xff]
    %v92 = vld [vmem:[#allocation4 + $0x30] sm:$0xff]
    %v93 = vld [vmem:[#allocation4 + $0x38] sm:$0xff]
    %v94 = vpack.c.bf16 %v87, %v86
    %v95 = vpack.c.bf16 %v89, %v88
    %v96 = vpack.c.bf16 %v91, %v90
    %v97 = vpack.c.bf16 %v93, %v92
    %v98 = vld [vmem:[#allocation7] sm:$0xff]
    %v99 = vld [vmem:[#allocation7 + $0x8] sm:$0xf]
    %v100 = vld [vmem:[#allocation7 + $0xc] sm:$0x33]
    %v101 = vld [vmem:[#allocation7 + $0x14] sm:$0x3]
    %v102 = vld [vmem:[#allocation10] sm:$0x7]
    %v104 = vlaneseq
    %v105 = vshrl.u32 %v104, 7
    %v106 = vsub.s32 0, %v105
    %v107 = vrot.slane %v102, %v106
    %v108 = vlaneseq
    %v109 = vshrl.u32 %v108, 7
    %v110 = vsub.s32 1, %v109
    %v111 = vrot.slane %v102, %v110
    %v112 = vlaneseq
    %v113 = vshrl.u32 %v112, 7
    %v114 = vsub.s32 2, %v113
    %v115 = vrot.slane %v102, %v114
    %v123 = vunpack.c.l.b16 %v98
    %v124 = vunpack.c.h.b16 %v98
    %v125 = vunpack.c.l.b16 %v99
    %v126 = vunpack.c.l.b16 %v100
    %v127 = vunpack.c.h.b16 %v100
    %v128 = vunpack.c.l.b16 %v101
    %v129 = vpack.c.b16 %v126, %v123
    %v130 = vpack.c.b16 %v127, %v124
    %v131 = vpack.c.b16 %v128, %v125
    %vm132 = vcmask 97280
    %v134 = vsel %vm132, %v94, 0
    %v137 = vsel %vm132, %v95, 0
    %v140 = vsel %vm132, %v96, 0
    %v143 = vsel %vm132, %v97, 0
    %vm145 = vcmask 1045504
    %v147 = vsel %vm145, %v129, 0
    %v150 = vsel %vm145, %v130, 0
    %v153 = vsel %vm145, %v131, 0
    %155 = vmatprep.subr.bf16.mxu0 %v150
    %156 = vmatpush1.bf16.msra.mxu0 %v147
    %157 = vmatprep.subr.bf16.mxu0 0
    %158 = vmatpush1.bf16.msra.mxu0 0
    %159 = vmatprep.subr.bf16.mxu0 0
    %160 = vmatpush1.bf16.msra.mxu0 0
    %161 = vmatprep.subr.bf16.mxu0 0
    %162 = vmatpush1.bf16.msra.mxu0 0
    %163 = vmatprep.subr.bf16.mxu0 0
    %164 = vmatpush1.bf16.msra.mxu0 0
    %165 = vmatprep.subr.bf16.mxu0 0
    %166 = vmatpush1.bf16.msra.mxu0 0
    %167 = vmatprep.subr.bf16.mxu0 0
    %168 = vmatpush1.bf16.msra.mxu0 0
    %169 = vmatprep.subr.bf16.mxu0 0
    %170 = vmatpush1.bf16.msra.mxu0 0
    %171 = vmatprep.subr.bf16.mxu0 0
    %172 = vmatpush1.bf16.msra.mxu0 0
    %173 = vmatprep.subr.bf16.mxu0 0
    %174 = vmatpush1.bf16.msra.mxu0 0
    %175 = vmatprep.subr.bf16.mxu0 0
    %176 = vmatpush1.bf16.msra.mxu0 0
    %177 = vmatprep.subr.bf16.mxu0 0
    %178 = vmatpush1.bf16.msra.mxu0 0
    %179 = vmatprep.subr.bf16.mxu0 0
    %180 = vmatpush1.bf16.msra.mxu0 0
    %181 = vmatprep.subr.bf16.mxu0 0
    %182 = vmatpush1.bf16.msra.mxu0 0
    %183 = vmatprep.subr.bf16.mxu0 0
    %184 = vmatpush1.bf16.msra.mxu0 0
    %185 = vmatprep.subr.bf16.mxu0 0
    %186 = vmatpush1.bf16.msra.mxu0 0
    %187 = vmatprep.mubr.bf16.mxu0 0
    %188 = vmatmul.mubr.bf16.gmra.mrb[0].mxu0 %v134
    %v189 = vpop.f32.mrb[0].mxu0
    %v190 = vadd.f32 %v107, %v189
    %v191 = vpop.f32.mrb[0].mxu0
    %v192 = vadd.f32 %v111, %v191
    %v193 = vpop.f32.mrb[0].mxu0
    %v194 = vadd.f32 %v107, %v193
    %v195 = vpop.f32.mrb[0].mxu0
    %v196 = vadd.f32 %v111, %v195
    %197 = vmatprep.mubr.bf16.mxu0 0
    %198 = vmatmul.mubr.bf16.gmra.mrb[0].mxu0 %v137
    %v199 = vpop.f32.mrb[0].mxu0
    %v200 = vadd.f32 %v107, %v199
    %v201 = vpop.f32.mrb[0].mxu0
    %v202 = vadd.f32 %v111, %v201
    %v203 = vpop.f32.mrb[0].mxu0
    %v204 = vadd.f32 %v107, %v203
    %v205 = vpop.f32.mrb[0].mxu0
    %v206 = vadd.f32 %v111, %v205
    %207 = vmatprep.mubr.bf16.mxu0 0
    %208 = vmatmul.mubr.bf16.gmra.mrb[0].mxu0 %v140
    %v209 = vpop.f32.mrb[0].mxu0
    %v210 = vadd.f32 %v107, %v209
    %v211 = vpop.f32.mrb[0].mxu0
    %v212 = vadd.f32 %v111, %v211
    %v213 = vpop.f32.mrb[0].mxu0
    %v214 = vadd.f32 %v107, %v213
    %v215 = vpop.f32.mrb[0].mxu0
    %v216 = vadd.f32 %v111, %v215
    %217 = vmatprep.mubr.bf16.mxu0 0
    %218 = vmatmul.mubr.bf16.gmra.mrb[0].mxu0 %v143
    %v219 = vpop.f32.mrb[0].mxu0
    %v220 = vadd.f32 %v107, %v219
    %v221 = vpop.f32.mrb[0].mxu0
    %v222 = vadd.f32 %v111, %v221
    %v223 = vpop.f32.mrb[0].mxu0
    %v224 = vadd.f32 %v107, %v223
    %v225 = vpop.f32.mrb[0].mxu0
    %v226 = vadd.f32 %v111, %v225
    %227 = vdwg.mxu0
    %228 = vmatprep.subr.bf16.mxu0 0
    %229 = vmatpush1.bf16.msra.mxu0 %v153
    %230 = vmatprep.subr.bf16.mxu0 0
    %231 = vmatpush1.bf16.msra.mxu0 0
    %232 = vmatprep.subr.bf16.mxu0 0
    %233 = vmatpush1.bf16.msra.mxu0 0
    %234 = vmatprep.subr.bf16.mxu0 0
    %235 = vmatpush1.bf16.msra.mxu0 0
    %236 = vmatprep.subr.bf16.mxu0 0
    %237 = vmatpush1.bf16.msra.mxu0 0
    %238 = vmatprep.subr.bf16.mxu0 0
    %239 = vmatpush1.bf16.msra.mxu0 0
    %240 = vmatprep.subr.bf16.mxu0 0
    %241 = vmatpush1.bf16.msra.mxu0 0
    %242 = vmatprep.subr.bf16.mxu0 0
    %243 = vmatpush1.bf16.msra.mxu0 0
    %244 = vmatprep.subr.bf16.mxu0 0
    %245 = vmatpush1.bf16.msra.mxu0 0
    %246 = vmatprep.subr.bf16.mxu0 0
    %247 = vmatpush1.bf16.msra.mxu0 0
    %248 = vmatprep.subr.bf16.mxu0 0
    %249 = vmatpush1.bf16.msra.mxu0 0
    %250 = vmatprep.subr.bf16.mxu0 0
    %251 = vmatpush1.bf16.msra.mxu0 0
    %252 = vmatprep.subr.bf16.mxu0 0
    %253 = vmatpush1.bf16.msra.mxu0 0
    %254 = vmatprep.subr.bf16.mxu0 0
    %255 = vmatpush1.bf16.msra.mxu0 0
    %256 = vmatprep.subr.bf16.mxu0 0
    %257 = vmatpush1.bf16.msra.mxu0 0
    %258 = vmatprep.subr.bf16.mxu0 0
    %259 = vmatpush1.bf16.msra.mxu0 0
    %260 = vmatprep.mubr.bf16.mxu0 0
    %261 = vmatmul.mubr.bf16.gmra.mrb[0].mxu0 %v134
    %v262 = vpop.f32.mrb[0].mxu0
    %v263 = vadd.f32 %v115, %v262
    %v264 = vpop.f32.mrb[0].mxu0
    %v265 = vpop.f32.mrb[0].mxu0
    %v266 = vadd.f32 %v115, %v265
    %v267 = vpop.f32.mrb[0].mxu0
    %268 = vmatprep.mubr.bf16.mxu0 0
    %269 = vmatmul.mubr.bf16.gmra.mrb[0].mxu0 %v137
    %v270 = vpop.f32.mrb[0].mxu0
    %v271 = vadd.f32 %v115, %v270
    %v272 = vpop.f32.mrb[0].mxu0
    %v273 = vpop.f32.mrb[0].mxu0
    %v274 = vadd.f32 %v115, %v273
    %v275 = vpop.f32.mrb[0].mxu0
    %276 = vmatprep.mubr.bf16.mxu0 0
    %277 = vmatmul.mubr.bf16.gmra.mrb[0].mxu0 %v140
    %v278 = vpop.f32.mrb[0].mxu0
    %v279 = vadd.f32 %v115, %v278
    %v280 = vpop.f32.mrb[0].mxu0
    %v281 = vpop.f32.mrb[0].mxu0
    %v282 = vadd.f32 %v115, %v281
    %v283 = vpop.f32.mrb[0].mxu0
    %284 = vmatprep.mubr.bf16.mxu0 0
    %285 = vmatmul.mubr.bf16.gmra.mrb[0].mxu0 %v143
    %v286 = vpop.f32.mrb[0].mxu0
    %v287 = vadd.f32 %v115, %v286
    %v288 = vpop.f32.mrb[0].mxu0
    %v289 = vpop.f32.mrb[0].mxu0
    %v290 = vadd.f32 %v115, %v289
    %v291 = vpop.f32.mrb[0].mxu0
    %292 = vdwg.mxu0
    %293 = vst [vmem:[#allocation3] sm:$0xff] %v190
    %294 = vst [vmem:[#allocation3 + $0x8] sm:$0xff] %v192
    %295 = vst [vmem:[#allocation3 + $0x10] sm:$0xff] %v263
    %296 = vst [vmem:[#allocation3 + $0x18] sm:$0xff] %v194
    %297 = vst [vmem:[#allocation3 + $0x20] sm:$0xff] %v196
    %298 = vst [vmem:[#allocation3 + $0x28] sm:$0xff] %v266
    %299 = vst [vmem:[#allocation3 + $0x30] sm:$0xff] %v200
    %300 = vst [vmem:[#allocation3 + $0x38] sm:$0xff] %v202
    %301 = vst [vmem:[#allocation3 + $0x40] sm:$0xff] %v271
    %302 = vst [vmem:[#allocation3 + $0x48] sm:$0xff] %v204
    %303 = vst [vmem:[#allocation3 + $0x50] sm:$0xff] %v206
    %304 = vst [vmem:[#allocation3 + $0x58] sm:$0xff] %v274
    %305 = vst [vmem:[#allocation3 + $0x60] sm:$0xff] %v210
    %306 = vst [vmem:[#allocation3 + $0x68] sm:$0xff] %v212
    %307 = vst [vmem:[#allocation3 + $0x70] sm:$0xff] %v279
    %308 = vst [vmem:[#allocation3 + $0x78] sm:$0xff] %v214
    %309 = vst [vmem:[#allocation3 + $0x80] sm:$0xff] %v216
    %310 = vst [vmem:[#allocation3 + $0x88] sm:$0xff] %v282
    %311 = vst [vmem:[#allocation3 + $0x90] sm:$0xff] %v220
    %312 = vst [vmem:[#allocation3 + $0x98] sm:$0xff] %v222
    %313 = vst [vmem:[#allocation3 + $0xa0] sm:$0xff] %v287
    %314 = vst [vmem:[#allocation3 + $0xa8] sm:$0xff] %v224
    %315 = vst [vmem:[#allocation3 + $0xb0] sm:$0xff] %v226
    %316 = vst [vmem:[#allocation3 + $0xb8] sm:$0xff] %v290
    %v317 = vld [vmem:[#allocation9] sm:$0xff]
    %v318 = vld [vmem:[#allocation9 + $0x8] sm:$0xf]
    %v319 = vld [vmem:[#allocation9 + $0xc] sm:$0xff]
    %v320 = vld [vmem:[#allocation9 + $0x14] sm:$0xf]
    %v321 = vld [vmem:[#allocation9 + $0x18] sm:$0xff]
    %v322 = vld [vmem:[#allocation9 + $0x20] sm:$0xf]
    %v323 = vld [vmem:[#allocation9 + $0x24] sm:$0xff]
    %v324 = vld [vmem:[#allocation9 + $0x2c] sm:$0xf]
    %v325 = vld [vmem:[%s4] sm:$0x1]
    %v326 = vld [vmem:[#allocation2] sm:$0xff]
    %s327 = smul.u32 0, 3
    %s328 = smul.addr %s327, 8
    %s329 = scalar_lea.vmem [#allocation3], %s328
    %v330 = vld [vmem:[%s329] sm:$0xff]
    %v331 = vld [vmem:[%s329 + $0x8] sm:$0xff]
    %v332 = vld [vmem:[%s329 + $0x10] sm:$0xff]
    %v333 = vpack.c.bf16 %v326, %v326
    %v342 = vunpack.c.l.b16 %v317
    %v343 = vunpack.c.h.b16 %v317
    %v344 = vunpack.c.l.b16 %v318
    %v345 = vunpack.c.l.b16 %v319
    %v346 = vunpack.c.h.b16 %v319
    %v347 = vunpack.c.l.b16 %v320
    %v348 = vunpack.c.l.b16 %v321
    %v349 = vunpack.c.h.b16 %v321
    %v350 = vunpack.c.l.b16 %v322
    %v351 = vunpack.c.l.b16 %v323
    %v352 = vunpack.c.h.b16 %v323
    %v353 = vunpack.c.l.b16 %v324
    %v354 = vpack.c.b16 %v345, %v342
    %v355 = vpack.c.b16 %v346, %v343
    %v356 = vpack.c.b16 %v347, %v344
    %v357 = vpack.c.b16 %v351, %v348
    %v358 = vpack.c.b16 %v352, %v349
    %v359 = vpack.c.b16 %v353, %v350
    %vm366 = vcmask 261120
    %v368 = vsel %vm366, %v333, 0
    %370 = vmatprep.subr.bf16.mxu0 %v355
    %371 = vmatpush1.bf16.msra.mxu0 %v354
    %372 = vmatprep.subr.bf16.mxu0 %v358
    %373 = vmatpush1.bf16.msra.mxu0 %v357
    %374 = vmatprep.subr.bf16.mxu0 0
    %375 = vmatpush1.bf16.msra.mxu0 0
    %376 = vmatprep.subr.bf16.mxu0 0
    %377 = vmatpush1.bf16.msra.mxu0 0
    %378 = vmatprep.subr.bf16.mxu0 0
    %379 = vmatpush1.bf16.msra.mxu0 0
    %380 = vmatprep.subr.bf16.mxu0 0
    %381 = vmatpush1.bf16.msra.mxu0 0
    %382 = vmatprep.subr.bf16.mxu0 0
    %383 = vmatpush1.bf16.msra.mxu0 0
    %384 = vmatprep.subr.bf16.mxu0 0
    %385 = vmatpush1.bf16.msra.mxu0 0
    %386 = vmatprep.subr.bf16.mxu0 0
    %387 = vmatpush1.bf16.msra.mxu0 0
    %388 = vmatprep.subr.bf16.mxu0 0
    %389 = vmatpush1.bf16.msra.mxu0 0
    %390 = vmatprep.subr.bf16.mxu0 0
    %391 = vmatpush1.bf16.msra.mxu0 0
    %392 = vmatprep.subr.bf16.mxu0 0
    %393 = vmatpush1.bf16.msra.mxu0 0
    %394 = vmatprep.subr.bf16.mxu0 0
    %395 = vmatpush1.bf16.msra.mxu0 0
    %396 = vmatprep.subr.bf16.mxu0 0
    %397 = vmatpush1.bf16.msra.mxu0 0
    %398 = vmatprep.subr.bf16.mxu0 0
    %399 = vmatpush1.bf16.msra.mxu0 0
    %400 = vmatprep.subr.bf16.mxu0 0
    %401 = vmatpush1.bf16.msra.mxu0 0
    %402 = vmatprep.mubr.bf16.mxu0 0
    %403 = vmatmul.mubr.bf16.gmra.mrb[0].mxu0 %v368
    %v404 = vpop.f32.mrb[0].mxu0
    %v405 = vadd.f32 0.0, %v404
    %v406 = vpop.f32.mrb[0].mxu0
    %v407 = vadd.f32 0.0, %v406
    %v408 = vpop.f32.mrb[0].mxu0
    %v409 = vpop.f32.mrb[0].mxu0
    %410 = vdwg.mxu0
    %411 = vmatprep.subr.bf16.mxu0 0
    %412 = vmatpush1.bf16.msra.mxu0 %v356
    %413 = vmatprep.subr.bf16.mxu0 0
    %414 = vmatpush1.bf16.msra.mxu0 %v359
    %415 = vmatprep.subr.bf16.mxu0 0
    %416 = vmatpush1.bf16.msra.mxu0 0
    %417 = vmatprep.subr.bf16.mxu0 0
    %418 = vmatpush1.bf16.msra.mxu0 0
    %419 = vmatprep.subr.bf16.mxu0 0
    %420 = vmatpush1.bf16.msra.mxu0 0
    %421 = vmatprep.subr.bf16.mxu0 0
    %422 = vmatpush1.bf16.msra.mxu0 0
    %423 = vmatprep.subr.bf16.mxu0 0
    %424 = vmatpush1.bf16.msra.mxu0 0
    %425 = vmatprep.subr.bf16.mxu0 0
    %426 = vmatpush1.bf16.msra.mxu0 0
    %427 = vmatprep.subr.bf16.mxu0 0
    %428 = vmatpush1.bf16.msra.mxu0 0
    %429 = vmatprep.subr.bf16.mxu0 0
    %430 = vmatpush1.bf16.msra.mxu0 0
    %431 = vmatprep.subr.bf16.mxu0 0
    %432 = vmatpush1.bf16.msra.mxu0 0
    %433 = vmatprep.subr.bf16.mxu0 0
    %434 = vmatpush1.bf16.msra.mxu0 0
    %435 = vmatprep.subr.bf16.mxu0 0
    %436 = vmatpush1.bf16.msra.mxu0 0
    %437 = vmatprep.subr.bf16.mxu0 0
    %438 = vmatpush1.bf16.msra.mxu0 0
    %439 = vmatprep.subr.bf16.mxu0 0
    %440 = vmatpush1.bf16.msra.mxu0 0
    %441 = vmatprep.subr.bf16.mxu0 0
    %442 = vmatpush1.bf16.msra.mxu0 0
    %443 = vmatprep.mubr.bf16.mxu0 0
    %444 = vmatmul.mubr.bf16.gmra.mrb[0].mxu0 %v368
    %v445 = vpop.f32.mrb[0].mxu0
    %v446 = vadd.f32 0.0, %v445
    %v447 = vpop.f32.mrb[0].mxu0
    %v448 = vpop.f32.mrb[0].mxu0
    %v449 = vpop.f32.mrb[0].mxu0
    %450 = vdwg.mxu0
    %v451 = vadd.f32 %v330, %v405
    %v452 = vmul.f32 %v451, 0.5
    %v453 = vtanh.pop %v452
    %v454 = vmul.f32 %v453, 0.5
    %v455 = vadd.f32 %v454, 0.5
    %v456 = vadd.f32 %v331, %v407
    %v457 = vmul.f32 %v456, 0.5
    %v458 = vtanh.pop %v457
    %v459 = vmul.f32 %v458, 0.5
    %v460 = vadd.f32 %v459, 0.5
    %v462 = vlaneseq
    %v463 = vshrl.u32 %v462, 7
    %v464 = vsub.s32 0, %v463
    %v465 = vrot.slane %v325, %v464
    %v467 = vadd.f32 %v446, %v465
    %v468 = vmul.f32 %v455, %v467
    %v469 = vadd.f32 %v332, %v468
    %v470 = vtanh.pop %v469
    %v471 = vsub.f32 1.0, %v460
    %v472 = vmul.f32 %v471, %v470
    %v473 = vmul.f32 %v460, %v326
    %v474 = vadd.f32 %v472, %v473
    %s475 = smul.u32 1, 3
    %s476 = smul.addr %s475, 8
    %s477 = scalar_lea.vmem [#allocation3], %s476
    %v478 = vld [vmem:[%s477] sm:$0xff]
    %v479 = vld [vmem:[%s477 + $0x8] sm:$0xff]
    %v480 = vld [vmem:[%s477 + $0x10] sm:$0xff]
    %v481 = vpack.c.bf16 %v474, %v474
    %v483 = vsel %vm366, %v481, 0
    %485 = vmatprep.subr.bf16.mxu0 %v355
    %486 = vmatpush1.bf16.msra.mxu0 %v354
    %487 = vmatprep.subr.bf16.mxu0 %v358
    %488 = vmatpush1.bf16.msra.mxu0 %v357
    %489 = vmatprep.subr.bf16.mxu0 0
    %490 = vmatpush1.bf16.msra.mxu0 0
    %491 = vmatprep.subr.bf16.mxu0 0
    %492 = vmatpush1.bf16.msra.mxu0 0
    %493 = vmatprep.subr.bf16.mxu0 0
    %494 = vmatpush1.bf16.msra.mxu0 0
    %495 = vmatprep.subr.bf16.mxu0 0
    %496 = vmatpush1.bf16.msra.mxu0 0
    %497 = vmatprep.subr.bf16.mxu0 0
    %498 = vmatpush1.bf16.msra.mxu0 0
    %499 = vmatprep.subr.bf16.mxu0 0
    %500 = vmatpush1.bf16.msra.mxu0 0
    %501 = vmatprep.subr.bf16.mxu0 0
    %502 = vmatpush1.bf16.msra.mxu0 0
    %503 = vmatprep.subr.bf16.mxu0 0
    %504 = vmatpush1.bf16.msra.mxu0 0
    %505 = vmatprep.subr.bf16.mxu0 0
    %506 = vmatpush1.bf16.msra.mxu0 0
    %507 = vmatprep.subr.bf16.mxu0 0
    %508 = vmatpush1.bf16.msra.mxu0 0
    %509 = vmatprep.subr.bf16.mxu0 0
    %510 = vmatpush1.bf16.msra.mxu0 0
    %511 = vmatprep.subr.bf16.mxu0 0
    %512 = vmatpush1.bf16.msra.mxu0 0
    %513 = vmatprep.subr.bf16.mxu0 0
    %514 = vmatpush1.bf16.msra.mxu0 0
    %515 = vmatprep.subr.bf16.mxu0 0
    %516 = vmatpush1.bf16.msra.mxu0 0
    %517 = vmatprep.mubr.bf16.mxu0 0
    %518 = vmatmul.mubr.bf16.gmra.mrb[0].mxu0 %v483
    %v519 = vpop.f32.mrb[0].mxu0
    %v520 = vadd.f32 0.0, %v519
    %v521 = vpop.f32.mrb[0].mxu0
    %v522 = vadd.f32 0.0, %v521
    %v523 = vpop.f32.mrb[0].mxu0
    %v524 = vpop.f32.mrb[0].mxu0
    %525 = vdwg.mxu0
    %526 = vmatprep.subr.bf16.mxu0 0
    %527 = vmatpush1.bf16.msra.mxu0 %v356
    %528 = vmatprep.subr.bf16.mxu0 0
    %529 = vmatpush1.bf16.msra.mxu0 %v359
    %530 = vmatprep.subr.bf16.mxu0 0
    %531 = vmatpush1.bf16.msra.mxu0 0
    %532 = vmatprep.subr.bf16.mxu0 0
    %533 = vmatpush1.bf16.msra.mxu0 0
    %534 = vmatprep.subr.bf16.mxu0 0
    %535 = vmatpush1.bf16.msra.mxu0 0
    %536 = vmatprep.subr.bf16.mxu0 0
    %537 = vmatpush1.bf16.msra.mxu0 0
    %538 = vmatprep.subr.bf16.mxu0 0
    %539 = vmatpush1.bf16.msra.mxu0 0
    %540 = vmatprep.subr.bf16.mxu0 0
    %541 = vmatpush1.bf16.msra.mxu0 0
    %542 = vmatprep.subr.bf16.mxu0 0
    %543 = vmatpush1.bf16.msra.mxu0 0
    %544 = vmatprep.subr.bf16.mxu0 0
    %545 = vmatpush1.bf16.msra.mxu0 0
    %546 = vmatprep.subr.bf16.mxu0 0
    %547 = vmatpush1.bf16.msra.mxu0 0
    %548 = vmatprep.subr.bf16.mxu0 0
    %549 = vmatpush1.bf16.msra.mxu0 0
    %550 = vmatprep.subr.bf16.mxu0 0
    %551 = vmatpush1.bf16.msra.mxu0 0
    %552 = vmatprep.subr.bf16.mxu0 0
    %553 = vmatpush1.bf16.msra.mxu0 0
    %554 = vmatprep.subr.bf16.mxu0 0
    %555 = vmatpush1.bf16.msra.mxu0 0
    %556 = vmatprep.subr.bf16.mxu0 0
    %557 = vmatpush1.bf16.msra.mxu0 0
    %558 = vmatprep.mubr.bf16.mxu0 0
    %559 = vmatmul.mubr.bf16.gmra.mrb[0].mxu0 %v483
    %v560 = vpop.f32.mrb[0].mxu0
    %v561 = vadd.f32 0.0, %v560
    %v562 = vpop.f32.mrb[0].mxu0
    %v563 = vpop.f32.mrb[0].mxu0
    %v564 = vpop.f32.mrb[0].mxu0
    %565 = vdwg.mxu0
    %v566 = vadd.f32 %v478, %v520
    %v567 = vmul.f32 %v566, 0.5
    %v568 = vtanh.pop %v567
    %v569 = vmul.f32 %v568, 0.5
    %v570 = vadd.f32 %v569, 0.5
    %v571 = vadd.f32 %v479, %v522
    %v572 = vmul.f32 %v571, 0.5
    %v573 = vtanh.pop %v572
    %v574 = vmul.f32 %v573, 0.5
    %v575 = vadd.f32 %v574, 0.5
    %v576 = vadd.f32 %v561, %v465
    %v577 = vmul.f32 %v570, %v576
    %v578 = vadd.f32 %v480, %v577
    %v579 = vtanh.pop %v578
    %v580 = vsub.f32 1.0, %v575
    %v581 = vmul.f32 %v580, %v579
    %v582 = vmul.f32 %v575, %v474
    %v583 = vadd.f32 %v581, %v582
    %s584 = smul.u32 2, 3
    %s585 = smul.addr %s584, 8
    %s586 = scalar_lea.vmem [#allocation3], %s585
    %v587 = vld [vmem:[%s586] sm:$0xff]
    %v588 = vld [vmem:[%s586 + $0x8] sm:$0xff]
    %v589 = vld [vmem:[%s586 + $0x10] sm:$0xff]
    %v590 = vpack.c.bf16 %v583, %v583
    %v592 = vsel %vm366, %v590, 0
    %594 = vmatprep.subr.bf16.mxu0 %v355
    %595 = vmatpush1.bf16.msra.mxu0 %v354
    %596 = vmatprep.subr.bf16.mxu0 %v358
    %597 = vmatpush1.bf16.msra.mxu0 %v357
    %598 = vmatprep.subr.bf16.mxu0 0
    %599 = vmatpush1.bf16.msra.mxu0 0
    %600 = vmatprep.subr.bf16.mxu0 0
    %601 = vmatpush1.bf16.msra.mxu0 0
    %602 = vmatprep.subr.bf16.mxu0 0
    %603 = vmatpush1.bf16.msra.mxu0 0
    %604 = vmatprep.subr.bf16.mxu0 0
    %605 = vmatpush1.bf16.msra.mxu0 0
    %606 = vmatprep.subr.bf16.mxu0 0
    %607 = vmatpush1.bf16.msra.mxu0 0
    %608 = vmatprep.subr.bf16.mxu0 0
    %609 = vmatpush1.bf16.msra.mxu0 0
    %610 = vmatprep.subr.bf16.mxu0 0
    %611 = vmatpush1.bf16.msra.mxu0 0
    %612 = vmatprep.subr.bf16.mxu0 0
    %613 = vmatpush1.bf16.msra.mxu0 0
    %614 = vmatprep.subr.bf16.mxu0 0
    %615 = vmatpush1.bf16.msra.mxu0 0
    %616 = vmatprep.subr.bf16.mxu0 0
    %617 = vmatpush1.bf16.msra.mxu0 0
    %618 = vmatprep.subr.bf16.mxu0 0
    %619 = vmatpush1.bf16.msra.mxu0 0
    %620 = vmatprep.subr.bf16.mxu0 0
    %621 = vmatpush1.bf16.msra.mxu0 0
    %622 = vmatprep.subr.bf16.mxu0 0
    %623 = vmatpush1.bf16.msra.mxu0 0
    %624 = vmatprep.subr.bf16.mxu0 0
    %625 = vmatpush1.bf16.msra.mxu0 0
    %626 = vmatprep.mubr.bf16.mxu0 0
    %627 = vmatmul.mubr.bf16.gmra.mrb[0].mxu0 %v592
    %v628 = vpop.f32.mrb[0].mxu0
    %v629 = vadd.f32 0.0, %v628
    %v630 = vpop.f32.mrb[0].mxu0
    %v631 = vadd.f32 0.0, %v630
    %v632 = vpop.f32.mrb[0].mxu0
    %v633 = vpop.f32.mrb[0].mxu0
    %634 = vdwg.mxu0
    %635 = vmatprep.subr.bf16.mxu0 0
    %636 = vmatpush1.bf16.msra.mxu0 %v356
    %637 = vmatprep.subr.bf16.mxu0 0
    %638 = vmatpush1.bf16.msra.mxu0 %v359
    %639 = vmatprep.subr.bf16.mxu0 0
    %640 = vmatpush1.bf16.msra.mxu0 0
    %641 = vmatprep.subr.bf16.mxu0 0
    %642 = vmatpush1.bf16.msra.mxu0 0
    %643 = vmatprep.subr.bf16.mxu0 0
    %644 = vmatpush1.bf16.msra.mxu0 0
    %645 = vmatprep.subr.bf16.mxu0 0
    %646 = vmatpush1.bf16.msra.mxu0 0
    %647 = vmatprep.subr.bf16.mxu0 0
    %648 = vmatpush1.bf16.msra.mxu0 0
    %649 = vmatprep.subr.bf16.mxu0 0
    %650 = vmatpush1.bf16.msra.mxu0 0
    %651 = vmatprep.subr.bf16.mxu0 0
    %652 = vmatpush1.bf16.msra.mxu0 0
    %653 = vmatprep.subr.bf16.mxu0 0
    %654 = vmatpush1.bf16.msra.mxu0 0
    %655 = vmatprep.subr.bf16.mxu0 0
    %656 = vmatpush1.bf16.msra.mxu0 0
    %657 = vmatprep.subr.bf16.mxu0 0
    %658 = vmatpush1.bf16.msra.mxu0 0
    %659 = vmatprep.subr.bf16.mxu0 0
    %660 = vmatpush1.bf16.msra.mxu0 0
    %661 = vmatprep.subr.bf16.mxu0 0
    %662 = vmatpush1.bf16.msra.mxu0 0
    %663 = vmatprep.subr.bf16.mxu0 0
    %664 = vmatpush1.bf16.msra.mxu0 0
    %665 = vmatprep.subr.bf16.mxu0 0
    %666 = vmatpush1.bf16.msra.mxu0 0
    %667 = vmatprep.mubr.bf16.mxu0 0
    %668 = vmatmul.mubr.bf16.gmra.mrb[0].mxu0 %v592
    %v669 = vpop.f32.mrb[0].mxu0
    %v670 = vadd.f32 0.0, %v669
    %v671 = vpop.f32.mrb[0].mxu0
    %v672 = vpop.f32.mrb[0].mxu0
    %v673 = vpop.f32.mrb[0].mxu0
    %674 = vdwg.mxu0
    %v675 = vadd.f32 %v587, %v629
    %v676 = vmul.f32 %v675, 0.5
    %v677 = vtanh.pop %v676
    %v678 = vmul.f32 %v677, 0.5
    %v679 = vadd.f32 %v678, 0.5
    %v680 = vadd.f32 %v588, %v631
    %v681 = vmul.f32 %v680, 0.5
    %v682 = vtanh.pop %v681
    %v683 = vmul.f32 %v682, 0.5
    %v684 = vadd.f32 %v683, 0.5
    %v685 = vadd.f32 %v670, %v465
    %v686 = vmul.f32 %v679, %v685
    %v687 = vadd.f32 %v589, %v686
    %v688 = vtanh.pop %v687
    %v689 = vsub.f32 1.0, %v684
    %v690 = vmul.f32 %v689, %v688
    %v691 = vmul.f32 %v684, %v583
    %v692 = vadd.f32 %v690, %v691
    %s693 = smul.u32 3, 3
    %s694 = smul.addr %s693, 8
    %s695 = scalar_lea.vmem [#allocation3], %s694
    %v696 = vld [vmem:[%s695] sm:$0xff]
    %v697 = vld [vmem:[%s695 + $0x8] sm:$0xff]
    %v698 = vld [vmem:[%s695 + $0x10] sm:$0xff]
    %v699 = vpack.c.bf16 %v692, %v692
    %v701 = vsel %vm366, %v699, 0
    %703 = vmatprep.subr.bf16.mxu0 %v355
    %704 = vmatpush1.bf16.msra.mxu0 %v354
    %705 = vmatprep.subr.bf16.mxu0 %v358
    %706 = vmatpush1.bf16.msra.mxu0 %v357
    %707 = vmatprep.subr.bf16.mxu0 0
    %708 = vmatpush1.bf16.msra.mxu0 0
    %709 = vmatprep.subr.bf16.mxu0 0
    %710 = vmatpush1.bf16.msra.mxu0 0
    %711 = vmatprep.subr.bf16.mxu0 0
    %712 = vmatpush1.bf16.msra.mxu0 0
    %713 = vmatprep.subr.bf16.mxu0 0
    %714 = vmatpush1.bf16.msra.mxu0 0
    %715 = vmatprep.subr.bf16.mxu0 0
    %716 = vmatpush1.bf16.msra.mxu0 0
    %717 = vmatprep.subr.bf16.mxu0 0
    %718 = vmatpush1.bf16.msra.mxu0 0
    %719 = vmatprep.subr.bf16.mxu0 0
    %720 = vmatpush1.bf16.msra.mxu0 0
    %721 = vmatprep.subr.bf16.mxu0 0
    %722 = vmatpush1.bf16.msra.mxu0 0
    %723 = vmatprep.subr.bf16.mxu0 0
    %724 = vmatpush1.bf16.msra.mxu0 0
    %725 = vmatprep.subr.bf16.mxu0 0
    %726 = vmatpush1.bf16.msra.mxu0 0
    %727 = vmatprep.subr.bf16.mxu0 0
    %728 = vmatpush1.bf16.msra.mxu0 0
    %729 = vmatprep.subr.bf16.mxu0 0
    %730 = vmatpush1.bf16.msra.mxu0 0
    %731 = vmatprep.subr.bf16.mxu0 0
    %732 = vmatpush1.bf16.msra.mxu0 0
    %733 = vmatprep.subr.bf16.mxu0 0
    %734 = vmatpush1.bf16.msra.mxu0 0
    %735 = vmatprep.mubr.bf16.mxu0 0
    %736 = vmatmul.mubr.bf16.gmra.mrb[0].mxu0 %v701
    %v737 = vpop.f32.mrb[0].mxu0
    %v738 = vadd.f32 0.0, %v737
    %v739 = vpop.f32.mrb[0].mxu0
    %v740 = vadd.f32 0.0, %v739
    %v741 = vpop.f32.mrb[0].mxu0
    %v742 = vpop.f32.mrb[0].mxu0
    %743 = vdwg.mxu0
    %744 = vmatprep.subr.bf16.mxu0 0
    %745 = vmatpush1.bf16.msra.mxu0 %v356
    %746 = vmatprep.subr.bf16.mxu0 0
    %747 = vmatpush1.bf16.msra.mxu0 %v359
    %748 = vmatprep.subr.bf16.mxu0 0
    %749 = vmatpush1.bf16.msra.mxu0 0
    %750 = vmatprep.subr.bf16.mxu0 0
    %751 = vmatpush1.bf16.msra.mxu0 0
    %752 = vmatprep.subr.bf16.mxu0 0
    %753 = vmatpush1.bf16.msra.mxu0 0
    %754 = vmatprep.subr.bf16.mxu0 0
    %755 = vmatpush1.bf16.msra.mxu0 0
    %756 = vmatprep.subr.bf16.mxu0 0
    %757 = vmatpush1.bf16.msra.mxu0 0
    %758 = vmatprep.subr.bf16.mxu0 0
    %759 = vmatpush1.bf16.msra.mxu0 0
    %760 = vmatprep.subr.bf16.mxu0 0
    %761 = vmatpush1.bf16.msra.mxu0 0
    %762 = vmatprep.subr.bf16.mxu0 0
    %763 = vmatpush1.bf16.msra.mxu0 0
    %764 = vmatprep.subr.bf16.mxu0 0
    %765 = vmatpush1.bf16.msra.mxu0 0
    %766 = vmatprep.subr.bf16.mxu0 0
    %767 = vmatpush1.bf16.msra.mxu0 0
    %768 = vmatprep.subr.bf16.mxu0 0
    %769 = vmatpush1.bf16.msra.mxu0 0
    %770 = vmatprep.subr.bf16.mxu0 0
    %771 = vmatpush1.bf16.msra.mxu0 0
    %772 = vmatprep.subr.bf16.mxu0 0
    %773 = vmatpush1.bf16.msra.mxu0 0
    %774 = vmatprep.subr.bf16.mxu0 0
    %775 = vmatpush1.bf16.msra.mxu0 0
    %776 = vmatprep.mubr.bf16.mxu0 0
    %777 = vmatmul.mubr.bf16.gmra.mrb[0].mxu0 %v701
    %v778 = vpop.f32.mrb[0].mxu0
    %v779 = vadd.f32 0.0, %v778
    %v780 = vpop.f32.mrb[0].mxu0
    %v781 = vpop.f32.mrb[0].mxu0
    %v782 = vpop.f32.mrb[0].mxu0
    %783 = vdwg.mxu0
    %v784 = vadd.f32 %v696, %v738
    %v785 = vmul.f32 %v784, 0.5
    %v786 = vtanh.pop %v785
    %v787 = vmul.f32 %v786, 0.5
    %v788 = vadd.f32 %v787, 0.5
    %v789 = vadd.f32 %v697, %v740
    %v790 = vmul.f32 %v789, 0.5
    %v791 = vtanh.pop %v790
    %v792 = vmul.f32 %v791, 0.5
    %v793 = vadd.f32 %v792, 0.5
    %v794 = vadd.f32 %v779, %v465
    %v795 = vmul.f32 %v788, %v794
    %v796 = vadd.f32 %v698, %v795
    %v797 = vtanh.pop %v796
    %v798 = vsub.f32 1.0, %v793
    %v799 = vmul.f32 %v798, %v797
    %v800 = vmul.f32 %v793, %v692
    %v801 = vadd.f32 %v799, %v800
    %s802 = smul.u32 4, 3
    %s803 = smul.addr %s802, 8
    %s804 = scalar_lea.vmem [#allocation3], %s803
    %v805 = vld [vmem:[%s804] sm:$0xff]
    %v806 = vld [vmem:[%s804 + $0x8] sm:$0xff]
    %v807 = vld [vmem:[%s804 + $0x10] sm:$0xff]
    %v808 = vpack.c.bf16 %v801, %v801
    %v810 = vsel %vm366, %v808, 0
    %812 = vmatprep.subr.bf16.mxu0 %v355
    %813 = vmatpush1.bf16.msra.mxu0 %v354
    %814 = vmatprep.subr.bf16.mxu0 %v358
    %815 = vmatpush1.bf16.msra.mxu0 %v357
    %816 = vmatprep.subr.bf16.mxu0 0
    %817 = vmatpush1.bf16.msra.mxu0 0
    %818 = vmatprep.subr.bf16.mxu0 0
    %819 = vmatpush1.bf16.msra.mxu0 0
    %820 = vmatprep.subr.bf16.mxu0 0
    %821 = vmatpush1.bf16.msra.mxu0 0
    %822 = vmatprep.subr.bf16.mxu0 0
    %823 = vmatpush1.bf16.msra.mxu0 0
    %824 = vmatprep.subr.bf16.mxu0 0
    %825 = vmatpush1.bf16.msra.mxu0 0
    %826 = vmatprep.subr.bf16.mxu0 0
    %827 = vmatpush1.bf16.msra.mxu0 0
    %828 = vmatprep.subr.bf16.mxu0 0
    %829 = vmatpush1.bf16.msra.mxu0 0
    %830 = vmatprep.subr.bf16.mxu0 0
    %831 = vmatpush1.bf16.msra.mxu0 0
    %832 = vmatprep.subr.bf16.mxu0 0
    %833 = vmatpush1.bf16.msra.mxu0 0
    %834 = vmatprep.subr.bf16.mxu0 0
    %835 = vmatpush1.bf16.msra.mxu0 0
    %836 = vmatprep.subr.bf16.mxu0 0
    %837 = vmatpush1.bf16.msra.mxu0 0
    %838 = vmatprep.subr.bf16.mxu0 0
    %839 = vmatpush1.bf16.msra.mxu0 0
    %840 = vmatprep.subr.bf16.mxu0 0
    %841 = vmatpush1.bf16.msra.mxu0 0
    %842 = vmatprep.subr.bf16.mxu0 0
    %843 = vmatpush1.bf16.msra.mxu0 0
    %844 = vmatprep.mubr.bf16.mxu0 0
    %845 = vmatmul.mubr.bf16.gmra.mrb[0].mxu0 %v810
    %v846 = vpop.f32.mrb[0].mxu0
    %v847 = vadd.f32 0.0, %v846
    %v848 = vpop.f32.mrb[0].mxu0
    %v849 = vadd.f32 0.0, %v848
    %v850 = vpop.f32.mrb[0].mxu0
    %v851 = vpop.f32.mrb[0].mxu0
    %852 = vdwg.mxu0
    %853 = vmatprep.subr.bf16.mxu0 0
    %854 = vmatpush1.bf16.msra.mxu0 %v356
    %855 = vmatprep.subr.bf16.mxu0 0
    %856 = vmatpush1.bf16.msra.mxu0 %v359
    %857 = vmatprep.subr.bf16.mxu0 0
    %858 = vmatpush1.bf16.msra.mxu0 0
    %859 = vmatprep.subr.bf16.mxu0 0
    %860 = vmatpush1.bf16.msra.mxu0 0
    %861 = vmatprep.subr.bf16.mxu0 0
    %862 = vmatpush1.bf16.msra.mxu0 0
    %863 = vmatprep.subr.bf16.mxu0 0
    %864 = vmatpush1.bf16.msra.mxu0 0
    %865 = vmatprep.subr.bf16.mxu0 0
    %866 = vmatpush1.bf16.msra.mxu0 0
    %867 = vmatprep.subr.bf16.mxu0 0
    %868 = vmatpush1.bf16.msra.mxu0 0
    %869 = vmatprep.subr.bf16.mxu0 0
    %870 = vmatpush1.bf16.msra.mxu0 0
    %871 = vmatprep.subr.bf16.mxu0 0
    %872 = vmatpush1.bf16.msra.mxu0 0
    %873 = vmatprep.subr.bf16.mxu0 0
    %874 = vmatpush1.bf16.msra.mxu0 0
    %875 = vmatprep.subr.bf16.mxu0 0
    %876 = vmatpush1.bf16.msra.mxu0 0
    %877 = vmatprep.subr.bf16.mxu0 0
    %878 = vmatpush1.bf16.msra.mxu0 0
    %879 = vmatprep.subr.bf16.mxu0 0
    %880 = vmatpush1.bf16.msra.mxu0 0
    %881 = vmatprep.subr.bf16.mxu0 0
    %882 = vmatpush1.bf16.msra.mxu0 0
    %883 = vmatprep.subr.bf16.mxu0 0
    %884 = vmatpush1.bf16.msra.mxu0 0
    %885 = vmatprep.mubr.bf16.mxu0 0
    %886 = vmatmul.mubr.bf16.gmra.mrb[0].mxu0 %v810
    %v887 = vpop.f32.mrb[0].mxu0
    %v888 = vadd.f32 0.0, %v887
    %v889 = vpop.f32.mrb[0].mxu0
    %v890 = vpop.f32.mrb[0].mxu0
    %v891 = vpop.f32.mrb[0].mxu0
    %892 = vdwg.mxu0
    %v893 = vadd.f32 %v805, %v847
    %v894 = vmul.f32 %v893, 0.5
    %v895 = vtanh.pop %v894
    %v896 = vmul.f32 %v895, 0.5
    %v897 = vadd.f32 %v896, 0.5
    %v898 = vadd.f32 %v806, %v849
    %v899 = vmul.f32 %v898, 0.5
    %v900 = vtanh.pop %v899
    %v901 = vmul.f32 %v900, 0.5
    %v902 = vadd.f32 %v901, 0.5
    %v903 = vadd.f32 %v888, %v465
    %v904 = vmul.f32 %v897, %v903
    %v905 = vadd.f32 %v807, %v904
    %v906 = vtanh.pop %v905
    %v907 = vsub.f32 1.0, %v902
    %v908 = vmul.f32 %v907, %v906
    %v909 = vmul.f32 %v902, %v801
    %v910 = vadd.f32 %v908, %v909
    %s911 = smul.u32 5, 3
    %s912 = smul.addr %s911, 8
    %s913 = scalar_lea.vmem [#allocation3], %s912
    %v914 = vld [vmem:[%s913] sm:$0xff]
    %v915 = vld [vmem:[%s913 + $0x8] sm:$0xff]
    %v916 = vld [vmem:[%s913 + $0x10] sm:$0xff]
    %v917 = vpack.c.bf16 %v910, %v910
    %v919 = vsel %vm366, %v917, 0
    %921 = vmatprep.subr.bf16.mxu0 %v355
    %922 = vmatpush1.bf16.msra.mxu0 %v354
    %923 = vmatprep.subr.bf16.mxu0 %v358
    %924 = vmatpush1.bf16.msra.mxu0 %v357
    %925 = vmatprep.subr.bf16.mxu0 0
    %926 = vmatpush1.bf16.msra.mxu0 0
    %927 = vmatprep.subr.bf16.mxu0 0
    %928 = vmatpush1.bf16.msra.mxu0 0
    %929 = vmatprep.subr.bf16.mxu0 0
    %930 = vmatpush1.bf16.msra.mxu0 0
    %931 = vmatprep.subr.bf16.mxu0 0
    %932 = vmatpush1.bf16.msra.mxu0 0
    %933 = vmatprep.subr.bf16.mxu0 0
    %934 = vmatpush1.bf16.msra.mxu0 0
    %935 = vmatprep.subr.bf16.mxu0 0
    %936 = vmatpush1.bf16.msra.mxu0 0
    %937 = vmatprep.subr.bf16.mxu0 0
    %938 = vmatpush1.bf16.msra.mxu0 0
    %939 = vmatprep.subr.bf16.mxu0 0
    %940 = vmatpush1.bf16.msra.mxu0 0
    %941 = vmatprep.subr.bf16.mxu0 0
    %942 = vmatpush1.bf16.msra.mxu0 0
    %943 = vmatprep.subr.bf16.mxu0 0
    %944 = vmatpush1.bf16.msra.mxu0 0
    %945 = vmatprep.subr.bf16.mxu0 0
    %946 = vmatpush1.bf16.msra.mxu0 0
    %947 = vmatprep.subr.bf16.mxu0 0
    %948 = vmatpush1.bf16.msra.mxu0 0
    %949 = vmatprep.subr.bf16.mxu0 0
    %950 = vmatpush1.bf16.msra.mxu0 0
    %951 = vmatprep.subr.bf16.mxu0 0
    %952 = vmatpush1.bf16.msra.mxu0 0
    %953 = vmatprep.mubr.bf16.mxu0 0
    %954 = vmatmul.mubr.bf16.gmra.mrb[0].mxu0 %v919
    %v955 = vpop.f32.mrb[0].mxu0
    %v956 = vadd.f32 0.0, %v955
    %v957 = vpop.f32.mrb[0].mxu0
    %v958 = vadd.f32 0.0, %v957
    %v959 = vpop.f32.mrb[0].mxu0
    %v960 = vpop.f32.mrb[0].mxu0
    %961 = vdwg.mxu0
    %962 = vmatprep.subr.bf16.mxu0 0
    %963 = vmatpush1.bf16.msra.mxu0 %v356
    %964 = vmatprep.subr.bf16.mxu0 0
    %965 = vmatpush1.bf16.msra.mxu0 %v359
    %966 = vmatprep.subr.bf16.mxu0 0
    %967 = vmatpush1.bf16.msra.mxu0 0
    %968 = vmatprep.subr.bf16.mxu0 0
    %969 = vmatpush1.bf16.msra.mxu0 0
    %970 = vmatprep.subr.bf16.mxu0 0
    %971 = vmatpush1.bf16.msra.mxu0 0
    %972 = vmatprep.subr.bf16.mxu0 0
    %973 = vmatpush1.bf16.msra.mxu0 0
    %974 = vmatprep.subr.bf16.mxu0 0
    %975 = vmatpush1.bf16.msra.mxu0 0
    %976 = vmatprep.subr.bf16.mxu0 0
    %977 = vmatpush1.bf16.msra.mxu0 0
    %978 = vmatprep.subr.bf16.mxu0 0
    %979 = vmatpush1.bf16.msra.mxu0 0
    %980 = vmatprep.subr.bf16.mxu0 0
    %981 = vmatpush1.bf16.msra.mxu0 0
    %982 = vmatprep.subr.bf16.mxu0 0
    %983 = vmatpush1.bf16.msra.mxu0 0
    %984 = vmatprep.subr.bf16.mxu0 0
    %985 = vmatpush1.bf16.msra.mxu0 0
    %986 = vmatprep.subr.bf16.mxu0 0
    %987 = vmatpush1.bf16.msra.mxu0 0
    %988 = vmatprep.subr.bf16.mxu0 0
    %989 = vmatpush1.bf16.msra.mxu0 0
    %990 = vmatprep.subr.bf16.mxu0 0
    %991 = vmatpush1.bf16.msra.mxu0 0
    %992 = vmatprep.subr.bf16.mxu0 0
    %993 = vmatpush1.bf16.msra.mxu0 0
    %994 = vmatprep.mubr.bf16.mxu0 0
    %995 = vmatmul.mubr.bf16.gmra.mrb[0].mxu0 %v919
    %v996 = vpop.f32.mrb[0].mxu0
    %v997 = vadd.f32 0.0, %v996
    %v998 = vpop.f32.mrb[0].mxu0
    %v999 = vpop.f32.mrb[0].mxu0
    %v1000 = vpop.f32.mrb[0].mxu0
    %1001 = vdwg.mxu0
    %v1002 = vadd.f32 %v914, %v956
    %v1003 = vmul.f32 %v1002, 0.5
    %v1004 = vtanh.pop %v1003
    %v1005 = vmul.f32 %v1004, 0.5
    %v1006 = vadd.f32 %v1005, 0.5
    %v1007 = vadd.f32 %v915, %v958
    %v1008 = vmul.f32 %v1007, 0.5
    %v1009 = vtanh.pop %v1008
    %v1010 = vmul.f32 %v1009, 0.5
    %v1011 = vadd.f32 %v1010, 0.5
    %v1012 = vadd.f32 %v997, %v465
    %v1013 = vmul.f32 %v1006, %v1012
    %v1014 = vadd.f32 %v916, %v1013
    %v1015 = vtanh.pop %v1014
    %v1016 = vsub.f32 1.0, %v1011
    %v1017 = vmul.f32 %v1016, %v1015
    %v1018 = vmul.f32 %v1011, %v910
    %v1019 = vadd.f32 %v1017, %v1018
    %s1020 = smul.u32 6, 3
    %s1021 = smul.addr %s1020, 8
    %s1022 = scalar_lea.vmem [#allocation3], %s1021
    %v1023 = vld [vmem:[%s1022] sm:$0xff]
    %v1024 = vld [vmem:[%s1022 + $0x8] sm:$0xff]
    %v1025 = vld [vmem:[%s1022 + $0x10] sm:$0xff]
    %v1026 = vpack.c.bf16 %v1019, %v1019
    %v1028 = vsel %vm366, %v1026, 0
    %1030 = vmatprep.subr.bf16.mxu0 %v355
    %1031 = vmatpush1.bf16.msra.mxu0 %v354
    %1032 = vmatprep.subr.bf16.mxu0 %v358
    %1033 = vmatpush1.bf16.msra.mxu0 %v357
    %1034 = vmatprep.subr.bf16.mxu0 0
    %1035 = vmatpush1.bf16.msra.mxu0 0
    %1036 = vmatprep.subr.bf16.mxu0 0
    %1037 = vmatpush1.bf16.msra.mxu0 0
    %1038 = vmatprep.subr.bf16.mxu0 0
    %1039 = vmatpush1.bf16.msra.mxu0 0
    %1040 = vmatprep.subr.bf16.mxu0 0
    %1041 = vmatpush1.bf16.msra.mxu0 0
    %1042 = vmatprep.subr.bf16.mxu0 0
    %1043 = vmatpush1.bf16.msra.mxu0 0
    %1044 = vmatprep.subr.bf16.mxu0 0
    %1045 = vmatpush1.bf16.msra.mxu0 0
    %1046 = vmatprep.subr.bf16.mxu0 0
    %1047 = vmatpush1.bf16.msra.mxu0 0
    %1048 = vmatprep.subr.bf16.mxu0 0
    %1049 = vmatpush1.bf16.msra.mxu0 0
    %1050 = vmatprep.subr.bf16.mxu0 0
    %1051 = vmatpush1.bf16.msra.mxu0 0
    %1052 = vmatprep.subr.bf16.mxu0 0
    %1053 = vmatpush1.bf16.msra.mxu0 0
    %1054 = vmatprep.subr.bf16.mxu0 0
    %1055 = vmatpush1.bf16.msra.mxu0 0
    %1056 = vmatprep.subr.bf16.mxu0 0
    %1057 = vmatpush1.bf16.msra.mxu0 0
    %1058 = vmatprep.subr.bf16.mxu0 0
    %1059 = vmatpush1.bf16.msra.mxu0 0
    %1060 = vmatprep.subr.bf16.mxu0 0
    %1061 = vmatpush1.bf16.msra.mxu0 0
    %1062 = vmatprep.mubr.bf16.mxu0 0
    %1063 = vmatmul.mubr.bf16.gmra.mrb[0].mxu0 %v1028
    %v1064 = vpop.f32.mrb[0].mxu0
    %v1065 = vadd.f32 0.0, %v1064
    %v1066 = vpop.f32.mrb[0].mxu0
    %v1067 = vadd.f32 0.0, %v1066
    %v1068 = vpop.f32.mrb[0].mxu0
    %v1069 = vpop.f32.mrb[0].mxu0
    %1070 = vdwg.mxu0
    %1071 = vmatprep.subr.bf16.mxu0 0
    %1072 = vmatpush1.bf16.msra.mxu0 %v356
    %1073 = vmatprep.subr.bf16.mxu0 0
    %1074 = vmatpush1.bf16.msra.mxu0 %v359
    %1075 = vmatprep.subr.bf16.mxu0 0
    %1076 = vmatpush1.bf16.msra.mxu0 0
    %1077 = vmatprep.subr.bf16.mxu0 0
    %1078 = vmatpush1.bf16.msra.mxu0 0
    %1079 = vmatprep.subr.bf16.mxu0 0
    %1080 = vmatpush1.bf16.msra.mxu0 0
    %1081 = vmatprep.subr.bf16.mxu0 0
    %1082 = vmatpush1.bf16.msra.mxu0 0
    %1083 = vmatprep.subr.bf16.mxu0 0
    %1084 = vmatpush1.bf16.msra.mxu0 0
    %1085 = vmatprep.subr.bf16.mxu0 0
    %1086 = vmatpush1.bf16.msra.mxu0 0
    %1087 = vmatprep.subr.bf16.mxu0 0
    %1088 = vmatpush1.bf16.msra.mxu0 0
    %1089 = vmatprep.subr.bf16.mxu0 0
    %1090 = vmatpush1.bf16.msra.mxu0 0
    %1091 = vmatprep.subr.bf16.mxu0 0
    %1092 = vmatpush1.bf16.msra.mxu0 0
    %1093 = vmatprep.subr.bf16.mxu0 0
    %1094 = vmatpush1.bf16.msra.mxu0 0
    %1095 = vmatprep.subr.bf16.mxu0 0
    %1096 = vmatpush1.bf16.msra.mxu0 0
    %1097 = vmatprep.subr.bf16.mxu0 0
    %1098 = vmatpush1.bf16.msra.mxu0 0
    %1099 = vmatprep.subr.bf16.mxu0 0
    %1100 = vmatpush1.bf16.msra.mxu0 0
    %1101 = vmatprep.subr.bf16.mxu0 0
    %1102 = vmatpush1.bf16.msra.mxu0 0
    %1103 = vmatprep.mubr.bf16.mxu0 0
    %1104 = vmatmul.mubr.bf16.gmra.mrb[0].mxu0 %v1028
    %v1105 = vpop.f32.mrb[0].mxu0
    %v1106 = vadd.f32 0.0, %v1105
    %v1107 = vpop.f32.mrb[0].mxu0
    %v1108 = vpop.f32.mrb[0].mxu0
    %v1109 = vpop.f32.mrb[0].mxu0
    %1110 = vdwg.mxu0
    %v1111 = vadd.f32 %v1023, %v1065
    %v1112 = vmul.f32 %v1111, 0.5
    %v1113 = vtanh.pop %v1112
    %v1114 = vmul.f32 %v1113, 0.5
    %v1115 = vadd.f32 %v1114, 0.5
    %v1116 = vadd.f32 %v1024, %v1067
    %v1117 = vmul.f32 %v1116, 0.5
    %v1118 = vtanh.pop %v1117
    %v1119 = vmul.f32 %v1118, 0.5
    %v1120 = vadd.f32 %v1119, 0.5
    %v1121 = vadd.f32 %v1106, %v465
    %v1122 = vmul.f32 %v1115, %v1121
    %v1123 = vadd.f32 %v1025, %v1122
    %v1124 = vtanh.pop %v1123
    %v1125 = vsub.f32 1.0, %v1120
    %v1126 = vmul.f32 %v1125, %v1124
    %v1127 = vmul.f32 %v1120, %v1019
    %v1128 = vadd.f32 %v1126, %v1127
    %s1129 = smul.u32 7, 3
    %s1130 = smul.addr %s1129, 8
    %s1131 = scalar_lea.vmem [#allocation3], %s1130
    %v1132 = vld [vmem:[%s1131] sm:$0xff]
    %v1133 = vld [vmem:[%s1131 + $0x8] sm:$0xff]
    %v1134 = vld [vmem:[%s1131 + $0x10] sm:$0xff]
    %v1135 = vpack.c.bf16 %v1128, %v1128
    %v1137 = vsel %vm366, %v1135, 0
    %1139 = vmatprep.subr.bf16.mxu0 %v355
    %1140 = vmatpush1.bf16.msra.mxu0 %v354
    %1141 = vmatprep.subr.bf16.mxu0 %v358
    %1142 = vmatpush1.bf16.msra.mxu0 %v357
    %1143 = vmatprep.subr.bf16.mxu0 0
    %1144 = vmatpush1.bf16.msra.mxu0 0
    %1145 = vmatprep.subr.bf16.mxu0 0
    %1146 = vmatpush1.bf16.msra.mxu0 0
    %1147 = vmatprep.subr.bf16.mxu0 0
    %1148 = vmatpush1.bf16.msra.mxu0 0
    %1149 = vmatprep.subr.bf16.mxu0 0
    %1150 = vmatpush1.bf16.msra.mxu0 0
    %1151 = vmatprep.subr.bf16.mxu0 0
    %1152 = vmatpush1.bf16.msra.mxu0 0
    %1153 = vmatprep.subr.bf16.mxu0 0
    %1154 = vmatpush1.bf16.msra.mxu0 0
    %1155 = vmatprep.subr.bf16.mxu0 0
    %1156 = vmatpush1.bf16.msra.mxu0 0
    %1157 = vmatprep.subr.bf16.mxu0 0
    %1158 = vmatpush1.bf16.msra.mxu0 0
    %1159 = vmatprep.subr.bf16.mxu0 0
    %1160 = vmatpush1.bf16.msra.mxu0 0
    %1161 = vmatprep.subr.bf16.mxu0 0
    %1162 = vmatpush1.bf16.msra.mxu0 0
    %1163 = vmatprep.subr.bf16.mxu0 0
    %1164 = vmatpush1.bf16.msra.mxu0 0
    %1165 = vmatprep.subr.bf16.mxu0 0
    %1166 = vmatpush1.bf16.msra.mxu0 0
    %1167 = vmatprep.subr.bf16.mxu0 0
    %1168 = vmatpush1.bf16.msra.mxu0 0
    %1169 = vmatprep.subr.bf16.mxu0 0
    %1170 = vmatpush1.bf16.msra.mxu0 0
    %1171 = vmatprep.mubr.bf16.mxu0 0
    %1172 = vmatmul.mubr.bf16.gmra.mrb[0].mxu0 %v1137
    %v1173 = vpop.f32.mrb[0].mxu0
    %v1174 = vadd.f32 0.0, %v1173
    %v1175 = vpop.f32.mrb[0].mxu0
    %v1176 = vadd.f32 0.0, %v1175
    %v1177 = vpop.f32.mrb[0].mxu0
    %v1178 = vpop.f32.mrb[0].mxu0
    %1179 = vdwg.mxu0
    %1180 = vmatprep.subr.bf16.mxu0 0
    %1181 = vmatpush1.bf16.msra.mxu0 %v356
    %1182 = vmatprep.subr.bf16.mxu0 0
    %1183 = vmatpush1.bf16.msra.mxu0 %v359
    %1184 = vmatprep.subr.bf16.mxu0 0
    %1185 = vmatpush1.bf16.msra.mxu0 0
    %1186 = vmatprep.subr.bf16.mxu0 0
    %1187 = vmatpush1.bf16.msra.mxu0 0
    %1188 = vmatprep.subr.bf16.mxu0 0
    %1189 = vmatpush1.bf16.msra.mxu0 0
    %1190 = vmatprep.subr.bf16.mxu0 0
    %1191 = vmatpush1.bf16.msra.mxu0 0
    %1192 = vmatprep.subr.bf16.mxu0 0
    %1193 = vmatpush1.bf16.msra.mxu0 0
    %1194 = vmatprep.subr.bf16.mxu0 0
    %1195 = vmatpush1.bf16.msra.mxu0 0
    %1196 = vmatprep.subr.bf16.mxu0 0
    %1197 = vmatpush1.bf16.msra.mxu0 0
    %1198 = vmatprep.subr.bf16.mxu0 0
    %1199 = vmatpush1.bf16.msra.mxu0 0
    %1200 = vmatprep.subr.bf16.mxu0 0
    %1201 = vmatpush1.bf16.msra.mxu0 0
    %1202 = vmatprep.subr.bf16.mxu0 0
    %1203 = vmatpush1.bf16.msra.mxu0 0
    %1204 = vmatprep.subr.bf16.mxu0 0
    %1205 = vmatpush1.bf16.msra.mxu0 0
    %1206 = vmatprep.subr.bf16.mxu0 0
    %1207 = vmatpush1.bf16.msra.mxu0 0
    %1208 = vmatprep.subr.bf16.mxu0 0
    %1209 = vmatpush1.bf16.msra.mxu0 0
    %1210 = vmatprep.subr.bf16.mxu0 0
    %1211 = vmatpush1.bf16.msra.mxu0 0
    %1212 = vmatprep.mubr.bf16.mxu0 0
    %1213 = vmatmul.mubr.bf16.gmra.mrb[0].mxu0 %v1137
    %v1214 = vpop.f32.mrb[0].mxu0
    %v1215 = vadd.f32 0.0, %v1214
    %v1216 = vpop.f32.mrb[0].mxu0
    %v1217 = vpop.f32.mrb[0].mxu0
    %v1218 = vpop.f32.mrb[0].mxu0
    %1219 = vdwg.mxu0
    %v1220 = vadd.f32 %v1132, %v1174
    %v1221 = vmul.f32 %v1220, 0.5
    %v1222 = vtanh.pop %v1221
    %v1223 = vmul.f32 %v1222, 0.5
    %v1224 = vadd.f32 %v1223, 0.5
    %v1225 = vadd.f32 %v1133, %v1176
    %v1226 = vmul.f32 %v1225, 0.5
    %v1227 = vtanh.pop %v1226
    %v1228 = vmul.f32 %v1227, 0.5
    %v1229 = vadd.f32 %v1228, 0.5
    %v1230 = vadd.f32 %v1215, %v465
    %v1231 = vmul.f32 %v1224, %v1230
    %v1232 = vadd.f32 %v1134, %v1231
    %v1233 = vtanh.pop %v1232
    %v1234 = vsub.f32 1.0, %v1229
    %v1235 = vmul.f32 %v1234, %v1233
    %v1236 = vmul.f32 %v1229, %v1128
    %v1237 = vadd.f32 %v1235, %v1236
    %1238 = vst [vmem:[#allocation2] sm:$0xff] %v1237
    // Predicated region
    $region50: #{tpu_custom_call.1} parent=1 // pred_check
      %p1239 = pneg %p81
    $region51: #{tpu_custom_call.1} parent=1 // pred_check_branch
      %1241 = sbr.rel (%p1239) target = $region53
    $region52: #{tpu_custom_call.1} parent=1 // pred_region
      %v1242 = vpack.c.bf16 %v1237, %v1237
      %v1243 = vld [vmem:[%s5] sm:$0xf]
      %v1244 = vld [vmem:[%s5 + $0x4] sm:$0xf]
      %v1245 = vld [vmem:[%s5 + $0x8] sm:$0xf]
      %v1246 = vld [vmem:[%s5 + $0xc] sm:$0xf]
      %v1247 = vld [vmem:[%s6] sm:$0x1]
      %v1249 = vlaneseq
      %v1250 = vshrl.u32 %v1249, 7
      %v1251 = vsub.s32 0, %v1250
      %v1252 = vrot.slane %v1247, %v1251
      %v1258 = vunpack.c.l.b16 %v1243
      %v1259 = vunpack.c.l.b16 %v1244
      %v1260 = vunpack.c.l.b16 %v1245
      %v1261 = vunpack.c.l.b16 %v1246
      %v1262 = vpack.c.b16 %v1259, %v1258
      %v1263 = vpack.c.b16 %v1261, %v1260
      %v1267 = vsel %vm366, %v1242, 0
      %1269 = vmatprep.subr.bf16.mxu0 0
      %1270 = vmatpush1.bf16.msra.mxu0 %v1262
      %1271 = vmatprep.subr.bf16.mxu0 0
      %1272 = vmatpush1.bf16.msra.mxu0 %v1263
      %1273 = vmatprep.subr.bf16.mxu0 0
      %1274 = vmatpush1.bf16.msra.mxu0 0
      %1275 = vmatprep.subr.bf16.mxu0 0
      %1276 = vmatpush1.bf16.msra.mxu0 0
      %1277 = vmatprep.subr.bf16.mxu0 0
      %1278 = vmatpush1.bf16.msra.mxu0 0
      %1279 = vmatprep.subr.bf16.mxu0 0
      %1280 = vmatpush1.bf16.msra.mxu0 0
      %1281 = vmatprep.subr.bf16.mxu0 0
      %1282 = vmatpush1.bf16.msra.mxu0 0
      %1283 = vmatprep.subr.bf16.mxu0 0
      %1284 = vmatpush1.bf16.msra.mxu0 0
      %1285 = vmatprep.subr.bf16.mxu0 0
      %1286 = vmatpush1.bf16.msra.mxu0 0
      %1287 = vmatprep.subr.bf16.mxu0 0
      %1288 = vmatpush1.bf16.msra.mxu0 0
      %1289 = vmatprep.subr.bf16.mxu0 0
      %1290 = vmatpush1.bf16.msra.mxu0 0
      %1291 = vmatprep.subr.bf16.mxu0 0
      %1292 = vmatpush1.bf16.msra.mxu0 0
      %1293 = vmatprep.subr.bf16.mxu0 0
      %1294 = vmatpush1.bf16.msra.mxu0 0
      %1295 = vmatprep.subr.bf16.mxu0 0
      %1296 = vmatpush1.bf16.msra.mxu0 0
      %1297 = vmatprep.subr.bf16.mxu0 0
      %1298 = vmatpush1.bf16.msra.mxu0 0
      %1299 = vmatprep.subr.bf16.mxu0 0
      %1300 = vmatpush1.bf16.msra.mxu0 0
      %1301 = vmatprep.mubr.bf16.mxu0 0
      %1302 = vmatmul.mubr.bf16.gmra.mrb[0].mxu0 %v1267
      %v1303 = vpop.f32.mrb[0].mxu0
      %v1304 = vadd.f32 %v1252, %v1303
      %v1305 = vpop.f32.mrb[0].mxu0
      %v1306 = vpop.f32.mrb[0].mxu0
      %v1307 = vpop.f32.mrb[0].mxu0
      %1308 = vdwg.mxu0
      %1309 = vst [vmem:[#allocation12] sm:$0xff] %v1304
    $region53: #{tpu_custom_call.1} parent=1 // pred_fallthru
      _
    // Predicated region
    $region54: #{tpu_custom_call.1} parent=1 // pred_check
      _
    $region55: #{tpu_custom_call.1} parent=1 // pred_check_branch
      %1311 = sbr.rel (0) target = $region57
    $region56: #{tpu_custom_call.1} parent=1 // pred_region
      %s1313 = ssub.s32 128, 128
      %1314 = vsyncadd [#allocation6], %s1313
      %s1316 = sshll.u32 [#allocation12], 4
      %s1317 = int_to_ptr.vmem [resolvable:$true] %s1316
      %1319 = dma.vmem_to_hbm [thread:$0]  %s1317, 128, %s7, [#allocation6]
    $region57: #{tpu_custom_call.1} parent=1 // pred_fallthru
      _
    // Predicated region
    $region58: #{tpu_custom_call.1} parent=1 // pred_check
      _
    $region59: #{tpu_custom_call.1} parent=1 // pred_check_branch
      %1321 = sbr.rel (0) target = $region61
    $region60: #{tpu_custom_call.1} parent=1 // pred_region
      %1322 = dma.done [#allocation6], 128
    $region61: #{tpu_custom_call.1} parent=1 // pred_fallthru
      _
    %1323 = vsyncpa [#allocation5], 1
    %1324 = vsyncpa [#allocation8], 1
    %1325 = vsyncpa [#allocation11], 1
    %1326 = vsyncpa [#allocation6], 1

</llo_original>
